<compile_context>
chip_gen: v7x
topology: tpu7x:2x2x1
jax: 0.10.0
libtpu: 0.0.40
codegen_flags: <defaults>
</compile_context>

<pallas_src>
import math
import jax
import jax.numpy as jnp
from jax.experimental import pallas as pl
from jax.experimental.pallas import tpu as pltpu

# ---------------------------------------------------------------- config -----
B, S, H = 2, 8, 32          # batch, sub-word seq len, hidden size
NH, FFN = 2, 64             # attention heads, FFN inner size
LAYERS = 2
VOCAB, TYPES = 100, 2
DH = H // NH
LN_EPS = 1e-12
H_PAD = 128                 # lane-dense output width (multiple of 128)


def _layer_norm(x, gamma, beta):
    mu = jnp.mean(x, axis=-1, keepdims=True)
    var = jnp.mean((x - mu) ** 2, axis=-1, keepdims=True)
    return (x - mu) * jax.lax.rsqrt(var + LN_EPS) * gamma + beta


# ------------------------------------------------ fused encoder + pooling ----
def fused_encoder_kernel(x_ref, bias_ref, offs_ref,
                         wq_ref, bq_ref, wk_ref, bk_ref, wv_ref, bv_ref,
                         wo_ref, bo_ref, ln1g_ref, ln1b_ref,
                         w1_ref, b1_ref, w2_ref, b2_ref, ln2g_ref, ln2b_ref,
                         hid_ref, word_ref, x_sc):
    layer = pl.program_id(1)

    # Load the embeddings into the resident VMEM accumulator at layer 0.
    @pl.when(layer == 0)
    def _():
        x_sc[...] = x_ref[0].astype(jnp.float32)

    x = x_sc[...]                                     # [S, H] f32, VMEM-resident
    mask_bias = bias_ref[0]                           # [1, S] additive key mask

    # ---- multi-head self-attention: all heads via batched dot_generals ----
    xb = jnp.broadcast_to(x.astype(jnp.bfloat16)[None], (NH, S, H))
    qh = jnp.einsum('hsk,hkd->hsd', xb, wq_ref[0],
                    preferred_element_type=jnp.float32) + bq_ref[0]   # [NH,S,DH]
    kh = jnp.einsum('hsk,hkd->hsd', xb, wk_ref[0],
                    preferred_element_type=jnp.float32) + bk_ref[0]
    vh = jnp.einsum('hsk,hkd->hsd', xb, wv_ref[0],
                    preferred_element_type=jnp.float32) + bv_ref[0]

    scores = jnp.einsum('hqd,hkd->hqk', qh.astype(jnp.bfloat16),
                        kh.astype(jnp.bfloat16),
                        preferred_element_type=jnp.float32)           # [NH,S,S]
    scores = scores * (1.0 / math.sqrt(DH)) + mask_bias

    # f32 softmax with EUP reciprocal for the denominator
    m = jnp.max(scores, axis=-1, keepdims=True)
    e = jnp.exp(scores - m)
    denom = jnp.sum(e, axis=-1, keepdims=True)
    probs = e * pl.reciprocal(denom, approx=True)

    ctx = jnp.einsum('hqk,hkd->hqd', probs.astype(jnp.bfloat16),
                     vh.astype(jnp.bfloat16),
                     preferred_element_type=jnp.float32)              # [NH,S,DH]

    # Output projection with the head-merge folded in (per-head partials + sum)
    proj = jnp.einsum('hsd,hdn->hsn', ctx.astype(jnp.bfloat16), wo_ref[0],
                      preferred_element_type=jnp.float32)             # [NH,S,H]
    attn = jnp.sum(proj, axis=0) + bo_ref[0]                          # [S,H]

    y = _layer_norm(x + attn, ln1g_ref[0], ln1b_ref[0])

    # ---- feed-forward (bf16 MXU operands, f32 accumulation / elementwise) ----
    h1 = jnp.dot(y.astype(jnp.bfloat16), w1_ref[0],
                 preferred_element_type=jnp.float32) + b1_ref[0]
    # TODO(synk): HF BERT uses exact (erf) GELU; tanh approximation used here.
    h1 = jax.nn.gelu(h1, approximate=True)
    h2 = jnp.dot(h1.astype(jnp.bfloat16), w2_ref[0],
                 preferred_element_type=jnp.float32) + b2_ref[0]
    out = _layer_norm(y + h2, ln2g_ref[0], ln2b_ref[0])

    x_sc[...] = out

    # ---- epilogue on the last layer: write outputs + fused scatter-mean ----
    @pl.when(layer == pl.num_programs(1) - 1)
    def _():
        lane_pad = jnp.zeros((S, H_PAD - H), jnp.float32)
        hid_ref[0] = jnp.concatenate([out, lane_pad], axis=-1).astype(hid_ref.dtype)

        # merge_scatter: one-hot matmul + count clamp + reciprocal multiply
        offs = offs_ref[0]                                       # [1, S] int32
        w_pad = word_ref.shape[1]
        word_ids = jax.lax.broadcasted_iota(jnp.int32, (w_pad, S), 0)
        onehot = (word_ids == offs).astype(jnp.float32)          # [W_PAD, S]
        summed = jnp.dot(onehot.astype(jnp.bfloat16), out.astype(jnp.bfloat16),
                         preferred_element_type=jnp.float32)     # [W_PAD, H]
        count = jnp.maximum(jnp.sum(onehot, axis=-1, keepdims=True), 1.0)
        merged = summed * pl.reciprocal(count, approx=True)
        word_pad = jnp.zeros((w_pad, H_PAD - H), jnp.float32)
        word_ref[0] = jnp.concatenate([merged, word_pad], axis=-1).astype(word_ref.dtype)


def fused_encoder_forward(x_emb, mask_bias, offs, stacked, num_words):
    """One pallas_call for the whole encoder stack + scatter-mean pooling."""
    w_pad = max(8, ((num_words + 7) // 8) * 8)       # sublane-multiple word dim

    weight_specs = []
    for p in stacked:
        nd = p.ndim
        weight_specs.append(
            pl.BlockSpec((1,) + p.shape[1:],
                         lambda b, l, _nd=nd: (l,) + (0,) * (_nd - 1)))

    in_specs = [pl.BlockSpec((1, S, H), lambda b, l: (b, 0, 0)),      # embeddings
                pl.BlockSpec((1, 1, S), lambda b, l: (b, 0, 0)),      # mask bias
                pl.BlockSpec((1, 1, S), lambda b, l: (b, 0, 0))]      # offsets
    in_specs += weight_specs

    out_specs = [pl.BlockSpec((1, S, H_PAD), lambda b, l: (b, 0, 0)),
                 pl.BlockSpec((1, w_pad, H_PAD), lambda b, l: (b, 0, 0))]

    hid_p, word_p = pl.pallas_call(
        fused_encoder_kernel,
        grid=(B, LAYERS),
        in_specs=in_specs,
        out_specs=out_specs,
        out_shape=(jax.ShapeDtypeStruct((B, S, H_PAD), jnp.float32),
                   jax.ShapeDtypeStruct((B, w_pad, H_PAD), jnp.float32)),
        scratch_shapes=[pltpu.VMEM((S, H), jnp.float32)],   # resident activations
        compiler_params=pltpu.CompilerParams(
            dimension_semantics=("parallel", "arbitrary")),
    )(x_emb, mask_bias, offs, *stacked)

    # slice the lane/word padding back off
    return hid_p[:, :, :H], word_p[:, :num_words, :H]


# ----------------------------------------------------------- parameters ------
def init_params(key):
    def normal(k, shape):
        return 0.02 * jax.random.normal(k, shape, jnp.float32)

    keys = iter(jax.random.split(key, 8 + LAYERS * 8))
    embed_params = (
        normal(next(keys), (VOCAB, H)),   # word embeddings
        normal(next(keys), (S, H)),       # position embeddings
        normal(next(keys), (TYPES, H)),   # token-type embeddings
        jnp.ones((1, H), jnp.float32),    # embedding LN gamma
        jnp.zeros((1, H), jnp.float32),   # embedding LN beta
    )
    layer_params = []
    for _ in range(LAYERS):
        layer_params.append((
            normal(next(keys), (H, H)), jnp.zeros((1, H), jnp.float32),     # Wq, bq
            normal(next(keys), (H, H)), jnp.zeros((1, H), jnp.float32),     # Wk, bk
            normal(next(keys), (H, H)), jnp.zeros((1, H), jnp.float32),     # Wv, bv
            normal(next(keys), (H, H)), jnp.zeros((1, H), jnp.float32),     # Wo, bo
            jnp.ones((1, H), jnp.float32), jnp.zeros((1, H), jnp.float32),  # LN1
            normal(next(keys), (H, FFN)), jnp.zeros((1, FFN), jnp.float32), # W1, b1
            normal(next(keys), (FFN, H)), jnp.zeros((1, H), jnp.float32),   # W2, b2
            jnp.ones((1, H), jnp.float32), jnp.zeros((1, H), jnp.float32),  # LN2
        ))
    return embed_params, layer_params


def prepare_stacked_params(layer_params):
    """Stack per-layer params on a leading LAYERS axis, pre-split attention
    weights per head ([NH, H, DH] / [NH, DH, H]), and cast matmul weights to
    bf16 (f32 accumulation in-kernel keeps precision)."""
    def stack(i):
        return jnp.stack([lp[i] for lp in layer_params], axis=0)

    wq, bq = stack(0), stack(1)
    wk, bk = stack(2), stack(3)
    wv, bv = stack(4), stack(5)
    wo, bo = stack(6), stack(7)
    ln1g, ln1b = stack(8), stack(9)
    w1, b1 = stack(10), stack(11)
    w2, b2 = stack(12), stack(13)
    ln2g, ln2b = stack(14), stack(15)

    def per_head_in(w):    # [L,H,H] -> [L,NH,H,DH]
        return w.reshape(LAYERS, H, NH, DH).transpose(0, 2, 1, 3)

    def per_head_bias(b):  # [L,1,H] -> [L,NH,1,DH]
        return b.reshape(LAYERS, 1, NH, DH).transpose(0, 2, 1, 3)

    def per_head_out(w):   # [L,H,H] -> [L,NH,DH,H]
        return w.reshape(LAYERS, NH, DH, H)

    bf = lambda a: a.astype(jnp.bfloat16)
    return (
        bf(per_head_in(wq)), per_head_bias(bq),
        bf(per_head_in(wk)), per_head_bias(bk),
        bf(per_head_in(wv)), per_head_bias(bv),
        bf(per_head_out(wo)), bo,
        ln1g, ln1b,
        bf(w1), b1, bf(w2), b2,
        ln2g, ln2b,
    )


def embed(input_ids, token_type_ids, embed_params):
    # gather + LN glue (data-dependent gather has no clean BlockSpec form)
    we, pe, te, g, b = embed_params
    x = we[input_ids] + pe[None, :, :] + te[token_type_ids]
    return _layer_norm(x, g, b)


# --------------------------------------------------------------- forward -----
def transformers_embedder_forward(input_ids, attention_mask, token_type_ids,
                                  scatter_offsets, params, num_words):
    embed_params, stacked = params
    mask_bias = ((1.0 - attention_mask.astype(jnp.float32)) * -1e9)[:, None, :]  # [B,1,S]

    # PyTorch: indices[indices == -1] = indices.max()   (global max)
    offs = jnp.where(scatter_offsets == -1, jnp.max(scatter_offsets), scatter_offsets)
    offs = offs.astype(jnp.int32)[:, None, :]                                    # [B,1,S]

    x = embed(input_ids, token_type_ids, embed_params)          # glue (gather + LN)
    last_hidden_state, word_embeddings = fused_encoder_forward(
        x, mask_bias, offs, stacked, num_words)                 # Pallas hot path

    # layer_pooling_strategy == 'last', subword_pooling_strategy == 'scatter'
    return {"word_embeddings": word_embeddings,
            "last_hidden_state": last_hidden_state}


# ------------------------------------------------------------------ main -----
if __name__ == "__main__":
    key = jax.random.PRNGKey(0)
    pkey, ikey = jax.random.split(key)
    embed_params, layer_params = init_params(pkey)
    params = (embed_params, prepare_stacked_params(layer_params))

    input_ids = jax.random.randint(ikey, (B, S), 0, VOCAB, dtype=jnp.int32)
    token_type_ids = jnp.zeros((B, S), jnp.int32)
    attention_mask = jnp.ones((B, S), jnp.float32)
    # sub-word -> word offsets; -1 marks padding sub-words (as in the PyTorch module)
    scatter_offsets = jnp.array([[0, 0, 1, 2, 2, 3, 4, 4],
                                 [0, 1, 1, 2, 3, 3, -1, -1]], jnp.int32)

    # TODO(synk): PyTorch computes num_words = indices.max()+1 at runtime; JAX
    # needs a static output shape, so it is derived from the concrete offsets here.
    num_words = int(scatter_offsets.max()) + 1

    out = transformers_embedder_forward(input_ids, attention_mask, token_type_ids,
                                        scatter_offsets, params, num_words)
    jax.block_until_ready(out["word_embeddings"])
    jax.block_until_ready(out["last_hidden_state"])

    assert out["word_embeddings"].shape == (B, num_words, H)
    assert out["last_hidden_state"].shape == (B, S, H)
    print("KERNEL_OK")
</pallas_src>

<mosaic_0001>
module attributes {stable_mosaic.version = 11 : i64} {
  func.func @fused_encoder_kernel(%arg0: i32, %arg1: i32, %arg2: memref<1x8x32xf32, #tpu.memory_space<vmem>>, %arg3: memref<1x1x8xf32, #tpu.memory_space<vmem>>, %arg4: memref<1x1x8xi32, #tpu.memory_space<vmem>>, %arg5: memref<1x2x32x16xbf16, #tpu.memory_space<vmem>>, %arg6: memref<1x2x1x16xf32, #tpu.memory_space<vmem>>, %arg7: memref<1x2x32x16xbf16, #tpu.memory_space<vmem>>, %arg8: memref<1x2x1x16xf32, #tpu.memory_space<vmem>>, %arg9: memref<1x2x32x16xbf16, #tpu.memory_space<vmem>>, %arg10: memref<1x2x1x16xf32, #tpu.memory_space<vmem>>, %arg11: memref<1x2x16x32xbf16, #tpu.memory_space<vmem>>, %arg12: memref<1x1x32xf32, #tpu.memory_space<vmem>>, %arg13: memref<1x1x32xf32, #tpu.memory_space<vmem>>, %arg14: memref<1x1x32xf32, #tpu.memory_space<vmem>>, %arg15: memref<1x32x64xbf16, #tpu.memory_space<vmem>>, %arg16: memref<1x1x64xf32, #tpu.memory_space<vmem>>, %arg17: memref<1x64x32xbf16, #tpu.memory_space<vmem>>, %arg18: memref<1x1x32xf32, #tpu.memory_space<vmem>>, %arg19: memref<1x1x32xf32, #tpu.memory_space<vmem>>, %arg20: memref<1x1x32xf32, #tpu.memory_space<vmem>>, %arg21: memref<1x8x128xf32, #tpu.memory_space<vmem>>, %arg22: memref<1x8x128xf32, #tpu.memory_space<vmem>>, %arg23: memref<8x32xf32, #tpu.memory_space<vmem>>) attributes {dimension_semantics = [#tpu.dimension_semantics<parallel>, #tpu.dimension_semantics<arbitrary>], iteration_bounds = array<i64: 2, 2>, scalar_prefetch = 0 : i64, scratch_operands = 1 : i64, tpu.core_type = #tpu.core_type<tc>, window_params = [{transform_indices = @transform_0, window_bounds = array<i64: 1, 8, 32>}, {transform_indices = @transform_1, window_bounds = array<i64: 1, 1, 8>}, {transform_indices = @transform_2, window_bounds = array<i64: 1, 1, 8>}, {transform_indices = @transform_3, window_bounds = array<i64: 1, 2, 32, 16>}, {transform_indices = @transform_4, window_bounds = array<i64: 1, 2, 1, 16>}, {transform_indices = @transform_5, window_bounds = array<i64: 1, 2, 32, 16>}, {transform_indices = @transform_6, window_bounds = array<i64: 1, 2, 1, 16>}, {transform_indices = @transform_7, window_bounds = array<i64: 1, 2, 32, 16>}, {transform_indices = @transform_8, window_bounds = array<i64: 1, 2, 1, 16>}, {transform_indices = @transform_9, window_bounds = array<i64: 1, 2, 16, 32>}, {transform_indices = @transform_10, window_bounds = array<i64: 1, 1, 32>}, {transform_indices = @transform_11, window_bounds = array<i64: 1, 1, 32>}, {transform_indices = @transform_12, window_bounds = array<i64: 1, 1, 32>}, {transform_indices = @transform_13, window_bounds = array<i64: 1, 32, 64>}, {transform_indices = @transform_14, window_bounds = array<i64: 1, 1, 64>}, {transform_indices = @transform_15, window_bounds = array<i64: 1, 64, 32>}, {transform_indices = @transform_16, window_bounds = array<i64: 1, 1, 32>}, {transform_indices = @transform_17, window_bounds = array<i64: 1, 1, 32>}, {transform_indices = @transform_18, window_bounds = array<i64: 1, 1, 32>}, {transform_indices = @transform_19, window_bounds = array<i64: 1, 8, 128>}, {transform_indices = @transform_20, window_bounds = array<i64: 1, 8, 128>}]} {
    %c0_i32 = arith.constant 0 : i32
    %0 = arith.cmpi eq, %arg1, %c0_i32 : i32
    %1 = arith.extui %0 : i1 to i32
    %c0_i32_0 = arith.constant 0 : i32
    %2 = arith.cmpi ne, %1, %c0_i32_0 : i32
    scf.if %2 {
      %c0_88 = arith.constant 0 : index
      %c0_89 = arith.constant 0 : index
      %c0_90 = arith.constant 0 : index
      %148 = vector.load %arg2[%c0_88, %c0_89, %c0_90] : memref<1x8x32xf32, #tpu.memory_space<vmem>>, vector<1x8x32xf32>
      %149 = vector.shape_cast %148 : vector<1x8x32xf32> to vector<8x32xf32>
      %c0_91 = arith.constant 0 : index
      %c0_92 = arith.constant 0 : index
      %150 = vector.load %arg23[%c0_91, %c0_92] : memref<8x32xf32, #tpu.memory_space<vmem>>, vector<8x32xf32>
      tpu.vector_store %arg23[%c0_91, %c0_92], %149 {strides = array<i32>} : memref<8x32xf32, #tpu.memory_space<vmem>>, vector<8x32xf32>,
    } else {
    }
    %c0 = arith.constant 0 : index
    %c0_1 = arith.constant 0 : index
    %3 = vector.load %arg23[%c0, %c0_1] : memref<8x32xf32, #tpu.memory_space<vmem>>, vector<8x32xf32>
    %c0_2 = arith.constant 0 : index
    %c0_3 = arith.constant 0 : index
    %c0_4 = arith.constant 0 : index
    %4 = vector.load %arg3[%c0_2, %c0_3, %c0_4] : memref<1x1x8xf32, #tpu.memory_space<vmem>>, vector<1x1x8xf32>
    %5 = vector.shape_cast %4 : vector<1x1x8xf32> to vector<1x8xf32>
    %6 = arith.truncf %3 : vector<8x32xf32> to vector<8x32xbf16>
    %7 = vector.shape_cast %6 : vector<8x32xbf16> to vector<1x8x32xbf16>
    %8 = vector.shape_cast %7 : vector<1x8x32xbf16> to vector<1x8x32xbf16>
    %9 = vector.broadcast %8 : vector<1x8x32xbf16> to vector<2x8x32xbf16>
    %c0_5 = arith.constant 0 : index
    %c0_6 = arith.constant 0 : index
    %c0_7 = arith.constant 0 : index
    %c0_8 = arith.constant 0 : index
    %10 = vector.load %arg5[%c0_5, %c0_6, %c0_7, %c0_8] : memref<1x2x32x16xbf16, #tpu.memory_space<vmem>>, vector<1x2x32x16xbf16>
    %11 = vector.shape_cast %10 : vector<1x2x32x16xbf16> to vector<2x32x16xbf16>
    "tpu.trace_start"() <{level = 10 : i32, message = "hsk,hkd->hsd"}> : () -> ()
    %cst = arith.constant dense<0.000000e+00> : vector<2x8x16xf32>
    %12 = tpu.matmul %9, %11, %cst {dimension_numbers = #tpu.dot_dimension_numbers<[2], [1], [1], [2], [0, 0, 0, 1, 1, 2], [0], [0]>} : vector<2x8x32xbf16>, vector<2x32x16xbf16>, vector<2x8x16xf32> -> vector<2x8x16xf32>
    "tpu.trace_stop"() : () -> ()
    %c0_9 = arith.constant 0 : index
    %c0_10 = arith.constant 0 : index
    %c0_11 = arith.constant 0 : index
    %c0_12 = arith.constant 0 : index
    %13 = vector.load %arg6[%c0_9, %c0_10, %c0_11, %c0_12] : memref<1x2x1x16xf32, #tpu.memory_space<vmem>>, vector<1x2x1x16xf32>
    %14 = vector.shape_cast %13 : vector<1x2x1x16xf32> to vector<2x1x16xf32>
    %15 = vector.broadcast %14 : vector<2x1x16xf32> to vector<2x8x16xf32>
    %16 = arith.addf %12, %15 : vector<2x8x16xf32>
    %c0_13 = arith.constant 0 : index
    %c0_14 = arith.constant 0 : index
    %c0_15 = arith.constant 0 : index
    %c0_16 = arith.constant 0 : index
    %17 = vector.load %arg7[%c0_13, %c0_14, %c0_15, %c0_16] : memref<1x2x32x16xbf16, #tpu.memory_space<vmem>>, vector<1x2x32x16xbf16>
    %18 = vector.shape_cast %17 : vector<1x2x32x16xbf16> to vector<2x32x16xbf16>
    "tpu.trace_start"() <{level = 10 : i32, message = "hsk,hkd->hsd"}> : () -> ()
    %cst_17 = arith.constant dense<0.000000e+00> : vector<2x8x16xf32>
    %19 = tpu.matmul %9, %18, %cst_17 {dimension_numbers = #tpu.dot_dimension_numbers<[2], [1], [1], [2], [0, 0, 0, 1, 1, 2], [0], [0]>} : vector<2x8x32xbf16>, vector<2x32x16xbf16>, vector<2x8x16xf32> -> vector<2x8x16xf32>
    "tpu.trace_stop"() : () -> ()
    %c0_18 = arith.constant 0 : index
    %c0_19 = arith.constant 0 : index
    %c0_20 = arith.constant 0 : index
    %c0_21 = arith.constant 0 : index
    %20 = vector.load %arg8[%c0_18, %c0_19, %c0_20, %c0_21] : memref<1x2x1x16xf32, #tpu.memory_space<vmem>>, vector<1x2x1x16xf32>
    %21 = vector.shape_cast %20 : vector<1x2x1x16xf32> to vector<2x1x16xf32>
    %22 = vector.broadcast %21 : vector<2x1x16xf32> to vector<2x8x16xf32>
    %23 = arith.addf %19, %22 : vector<2x8x16xf32>
    %c0_22 = arith.constant 0 : index
    %c0_23 = arith.constant 0 : index
    %c0_24 = arith.constant 0 : index
    %c0_25 = arith.constant 0 : index
    %24 = vector.load %arg9[%c0_22, %c0_23, %c0_24, %c0_25] : memref<1x2x32x16xbf16, #tpu.memory_space<vmem>>, vector<1x2x32x16xbf16>
    %25 = vector.shape_cast %24 : vector<1x2x32x16xbf16> to vector<2x32x16xbf16>
    "tpu.trace_start"() <{level = 10 : i32, message = "hsk,hkd->hsd"}> : () -> ()
    %cst_26 = arith.constant dense<0.000000e+00> : vector<2x8x16xf32>
    %26 = tpu.matmul %9, %25, %cst_26 {dimension_numbers = #tpu.dot_dimension_numbers<[2], [1], [1], [2], [0, 0, 0, 1, 1, 2], [0], [0]>} : vector<2x8x32xbf16>, vector<2x32x16xbf16>, vector<2x8x16xf32> -> vector<2x8x16xf32>
    "tpu.trace_stop"() : () -> ()
    %c0_27 = arith.constant 0 : index
    %c0_28 = arith.constant 0 : index
    %c0_29 = arith.constant 0 : index
    %c0_30 = arith.constant 0 : index
    %27 = vector.load %arg10[%c0_27, %c0_28, %c0_29, %c0_30] : memref<1x2x1x16xf32, #tpu.memory_space<vmem>>, vector<1x2x1x16xf32>
    %28 = vector.shape_cast %27 : vector<1x2x1x16xf32> to vector<2x1x16xf32>
    %29 = vector.broadcast %28 : vector<2x1x16xf32> to vector<2x8x16xf32>
    %30 = arith.addf %26, %29 : vector<2x8x16xf32>
    %31 = arith.truncf %16 : vector<2x8x16xf32> to vector<2x8x16xbf16>
    %32 = arith.truncf %23 : vector<2x8x16xf32> to vector<2x8x16xbf16>
    "tpu.trace_start"() <{level = 10 : i32, message = "hqd,hkd->hqk"}> : () -> ()
    %cst_31 = arith.constant dense<0.000000e+00> : vector<2x8x8xf32>
    %33 = tpu.matmul %31, %32, %cst_31 {dimension_numbers = #tpu.dot_dimension_numbers<[2], [2], [1], [1], [0, 0, 0, 1, 1, 1], [0], [0]>} : vector<2x8x16xbf16>, vector<2x8x16xbf16>, vector<2x8x8xf32> -> vector<2x8x8xf32>
    "tpu.trace_stop"() : () -> ()
    %cst_32 = arith.constant 2.500000e-01 : f32
    %34 = vector.broadcast %cst_32 : f32 to vector<2x8x8xf32>
    %35 = arith.mulf %33, %34 : vector<2x8x8xf32>
    %36 = vector.shape_cast %5 : vector<1x8xf32> to vector<1x1x8xf32>
    %37 = vector.broadcast %36 : vector<1x1x8xf32> to vector<2x8x8xf32>
    %38 = arith.addf %35, %37 : vector<2x8x8xf32>
    %cst_33 = arith.constant dense<0xFF800000> : vector<2x8xf32>
    %39 = vector.multi_reduction <maximumf>, %38, %cst_33 [2] : vector<2x8x8xf32> to vector<2x8xf32>
    %40 = vector.shape_cast %39 : vector<2x8xf32> to vector<2x8x1xf32>
    %41 = vector.broadcast %40 : vector<2x8x1xf32> to vector<2x8x8xf32>
    %42 = arith.subf %38, %41 : vector<2x8x8xf32>
    %43 = math.exp %42 : vector<2x8x8xf32>
    %cst_34 = arith.constant dense<0.000000e+00> : vector<2x8xf32>
    %44 = vector.multi_reduction <add>, %43, %cst_34 [2] : vector<2x8x8xf32> to vector<2x8xf32>
    %45 = vector.shape_cast %44 : vector<2x8xf32> to vector<2x8x1xf32>
    %46 = tpu.reciprocal %45 {approx = true} : vector<2x8x1xf32> -> vector<2x8x1xf32>
    %47 = vector.broadcast %46 : vector<2x8x1xf32> to vector<2x8x8xf32>
    %48 = arith.mulf %43, %47 : vector<2x8x8xf32>
    %49 = arith.truncf %48 : vector<2x8x8xf32> to vector<2x8x8xbf16>
    %50 = arith.truncf %30 : vector<2x8x16xf32> to vector<2x8x16xbf16>
    "tpu.trace_start"() <{level = 10 : i32, message = "hqk,hkd->hqd"}> : () -> ()
    %cst_35 = arith.constant dense<0.000000e+00> : vector<2x8x16xf32>
    %51 = tpu.matmul %49, %50, %cst_35 {dimension_numbers = #tpu.dot_dimension_numbers<[2], [1], [1], [2], [0, 0, 0, 1, 1, 2], [0], [0]>} : vector<2x8x8xbf16>, vector<2x8x16xbf16>, vector<2x8x16xf32> -> vector<2x8x16xf32>
    "tpu.trace_stop"() : () -> ()
    %52 = arith.truncf %51 : vector<2x8x16xf32> to vector<2x8x16xbf16>
    %c0_36 = arith.constant 0 : index
    %c0_37 = arith.constant 0 : index
    %c0_38 = arith.constant 0 : index
    %c0_39 = arith.constant 0 : index
    %53 = vector.load %arg11[%c0_36, %c0_37, %c0_38, %c0_39] : memref<1x2x16x32xbf16, #tpu.memory_space<vmem>>, vector<1x2x16x32xbf16>
    %54 = vector.shape_cast %53 : vector<1x2x16x32xbf16> to vector<2x16x32xbf16>
    "tpu.trace_start"() <{level = 10 : i32, message = "hsd,hdn->hsn"}> : () -> ()
    %cst_40 = arith.constant dense<0.000000e+00> : vector<2x8x32xf32>
    %55 = tpu.matmul %52, %54, %cst_40 {dimension_numbers = #tpu.dot_dimension_numbers<[2], [1], [1], [2], [0, 0, 0, 1, 1, 2], [0], [0]>} : vector<2x8x16xbf16>, vector<2x16x32xbf16>, vector<2x8x32xf32> -> vector<2x8x32xf32>
    "tpu.trace_stop"() : () -> ()
    %cst_41 = arith.constant dense<0.000000e+00> : vector<8x32xf32>
    %56 = vector.multi_reduction <add>, %55, %cst_41 [0] : vector<2x8x32xf32> to vector<8x32xf32>
    %c0_42 = arith.constant 0 : index
    %c0_43 = arith.constant 0 : index
    %c0_44 = arith.constant 0 : index
    %57 = vector.load %arg12[%c0_42, %c0_43, %c0_44] : memref<1x1x32xf32, #tpu.memory_space<vmem>>, vector<1x1x32xf32>
    %58 = vector.shape_cast %57 : vector<1x1x32xf32> to vector<1x32xf32>
    %59 = vector.broadcast %58 : vector<1x32xf32> to vector<8x32xf32>
    %60 = arith.addf %56, %59 : vector<8x32xf32>
    %61 = arith.addf %3, %60 : vector<8x32xf32>
    %c0_45 = arith.constant 0 : index
    %c0_46 = arith.constant 0 : index
    %c0_47 = arith.constant 0 : index
    %62 = vector.load %arg13[%c0_45, %c0_46, %c0_47] : memref<1x1x32xf32, #tpu.memory_space<vmem>>, vector<1x1x32xf32>
    %63 = vector.shape_cast %62 : vector<1x1x32xf32> to vector<1x32xf32>
    %c0_48 = arith.constant 0 : index
    %c0_49 = arith.constant 0 : index
    %c0_50 = arith.constant 0 : index
    %64 = vector.load %arg14[%c0_48, %c0_49, %c0_50] : memref<1x1x32xf32, #tpu.memory_space<vmem>>, vector<1x1x32xf32>
    %65 = vector.shape_cast %64 : vector<1x1x32xf32> to vector<1x32xf32>
    %cst_51 = arith.constant dense<0.000000e+00> : vector<8xf32>
    %66 = vector.multi_reduction <add>, %61, %cst_51 [1] : vector<8x32xf32> to vector<8xf32>
    %67 = vector.shape_cast %66 : vector<8xf32> to vector<8x1xf32>
    %cst_52 = arith.constant 3.200000e+01 : f32
    %68 = vector.broadcast %cst_52 : f32 to vector<8x1xf32>
    %69 = arith.divf %67, %68 : vector<8x1xf32>
    %70 = vector.broadcast %69 : vector<8x1xf32> to vector<8x32xf32>
    %71 = arith.subf %61, %70 : vector<8x32xf32>
    %72 = arith.mulf %71, %71 : vector<8x32xf32>
    %cst_53 = arith.constant dense<0.000000e+00> : vector<8xf32>
    %73 = vector.multi_reduction <add>, %72, %cst_53 [1] : vector<8x32xf32> to vector<8xf32>
    %74 = vector.shape_cast %73 : vector<8xf32> to vector<8x1xf32>
    %cst_54 = arith.constant 3.200000e+01 : f32
    %75 = vector.broadcast %cst_54 : f32 to vector<8x1xf32>
    %76 = arith.divf %74, %75 : vector<8x1xf32>
    %77 = vector.broadcast %69 : vector<8x1xf32> to vector<8x32xf32>
    %78 = arith.subf %61, %77 : vector<8x32xf32>
    %cst_55 = arith.constant 9.99999996E-13 : f32
    %79 = vector.broadcast %cst_55 : f32 to vector<8x1xf32>
    %80 = arith.addf %76, %79 : vector<8x1xf32>
    %81 = math.rsqrt %80 : vector<8x1xf32>
    %82 = vector.broadcast %81 : vector<8x1xf32> to vector<8x32xf32>
    %83 = arith.mulf %78, %82 : vector<8x32xf32>
    %84 = vector.broadcast %63 : vector<1x32xf32> to vector<8x32xf32>
    %85 = arith.mulf %83, %84 : vector<8x32xf32>
    %86 = vector.broadcast %65 : vector<1x32xf32> to vector<8x32xf32>
    %87 = arith.addf %85, %86 : vector<8x32xf32>
    %88 = arith.truncf %87 : vector<8x32xf32> to vector<8x32xbf16>
    %c0_56 = arith.constant 0 : index
    %c0_57 = arith.constant 0 : index
    %c0_58 = arith.constant 0 : index
    %89 = vector.load %arg15[%c0_56, %c0_57, %c0_58] : memref<1x32x64xbf16, #tpu.memory_space<vmem>>, vector<1x32x64xbf16>
    %90 = vector.shape_cast %89 : vector<1x32x64xbf16> to vector<32x64xbf16>
    %cst_59 = arith.constant dense<0.000000e+00> : vector<8x64xf32>
    %91 = tpu.matmul %88, %90, %cst_59 {dimension_numbers = #tpu.dot_dimension_numbers<[1], [0], [0], [1], [0, 0, 1, 1], [], []>} : vector<8x32xbf16>, vector<32x64xbf16>, vector<8x64xf32> -> vector<8x64xf32>
    %c0_60 = arith.constant 0 : index
    %c0_61 = arith.constant 0 : index
    %c0_62 = arith.constant 0 : index
    %92 = vector.load %arg16[%c0_60, %c0_61, %c0_62] : memref<1x1x64xf32, #tpu.memory_space<vmem>>, vector<1x1x64xf32>
    %93 = vector.shape_cast %92 : vector<1x1x64xf32> to vector<1x64xf32>
    %94 = vector.broadcast %93 : vector<1x64xf32> to vector<8x64xf32>
    %95 = arith.addf %91, %94 : vector<8x64xf32>
    %96 = arith.mulf %95, %95 : vector<8x64xf32>
    %97 = arith.mulf %95, %96 : vector<8x64xf32>
    %cst_63 = arith.constant 4.471500e-02 : f32
    %98 = vector.broadcast %cst_63 : f32 to vector<8x64xf32>
    %99 = arith.mulf %98, %97 : vector<8x64xf32>
    %100 = arith.addf %95, %99 : vector<8x64xf32>
    %cst_64 = arith.constant 0.797884583 : f32
    %101 = vector.broadcast %cst_64 : f32 to vector<8x64xf32>
    %102 = arith.mulf %101, %100 : vector<8x64xf32>
    %103 = math.tanh %102 : vector<8x64xf32>
    %cst_65 = arith.constant 1.000000e+00 : f32
    %104 = vector.broadcast %cst_65 : f32 to vector<8x64xf32>
    %105 = arith.addf %104, %103 : vector<8x64xf32>
    %cst_66 = arith.constant 5.000000e-01 : f32
    %106 = vector.broadcast %cst_66 : f32 to vector<8x64xf32>
    %107 = arith.mulf %106, %105 : vector<8x64xf32>
    %108 = arith.mulf %95, %107 : vector<8x64xf32>
    %109 = arith.truncf %108 : vector<8x64xf32> to vector<8x64xbf16>
    %c0_67 = arith.constant 0 : index
    %c0_68 = arith.constant 0 : index
    %c0_69 = arith.constant 0 : index
    %110 = vector.load %arg17[%c0_67, %c0_68, %c0_69] : memref<1x64x32xbf16, #tpu.memory_space<vmem>>, vector<1x64x32xbf16>
    %111 = vector.shape_cast %110 : vector<1x64x32xbf16> to vector<64x32xbf16>
    %cst_70 = arith.constant dense<0.000000e+00> : vector<8x32xf32>
    %112 = tpu.matmul %109, %111, %cst_70 {dimension_numbers = #tpu.dot_dimension_numbers<[1], [0], [0], [1], [0, 0, 1, 1], [], []>} : vector<8x64xbf16>, vector<64x32xbf16>, vector<8x32xf32> -> vector<8x32xf32>
    %c0_71 = arith.constant 0 : index
    %c0_72 = arith.constant 0 : index
    %c0_73 = arith.constant 0 : index
    %113 = vector.load %arg18[%c0_71, %c0_72, %c0_73] : memref<1x1x32xf32, #tpu.memory_space<vmem>>, vector<1x1x32xf32>
    %114 = vector.shape_cast %113 : vector<1x1x32xf32> to vector<1x32xf32>
    %115 = vector.broadcast %114 : vector<1x32xf32> to vector<8x32xf32>
    %116 = arith.addf %112, %115 : vector<8x32xf32>
    %117 = arith.addf %87, %116 : vector<8x32xf32>
    %c0_74 = arith.constant 0 : index
    %c0_75 = arith.constant 0 : index
    %c0_76 = arith.constant 0 : index
    %118 = vector.load %arg19[%c0_74, %c0_75, %c0_76] : memref<1x1x32xf32, #tpu.memory_space<vmem>>, vector<1x1x32xf32>
    %119 = vector.shape_cast %118 : vector<1x1x32xf32> to vector<1x32xf32>
    %c0_77 = arith.constant 0 : index
    %c0_78 = arith.constant 0 : index
    %c0_79 = arith.constant 0 : index
    %120 = vector.load %arg20[%c0_77, %c0_78, %c0_79] : memref<1x1x32xf32, #tpu.memory_space<vmem>>, vector<1x1x32xf32>
    %121 = vector.shape_cast %120 : vector<1x1x32xf32> to vector<1x32xf32>
    %cst_80 = arith.constant dense<0.000000e+00> : vector<8xf32>
    %122 = vector.multi_reduction <add>, %117, %cst_80 [1] : vector<8x32xf32> to vector<8xf32>
    %123 = vector.shape_cast %122 : vector<8xf32> to vector<8x1xf32>
    %cst_81 = arith.constant 3.200000e+01 : f32
    %124 = vector.broadcast %cst_81 : f32 to vector<8x1xf32>
    %125 = arith.divf %123, %124 : vector<8x1xf32>
    %126 = vector.broadcast %125 : vector<8x1xf32> to vector<8x32xf32>
    %127 = arith.subf %117, %126 : vector<8x32xf32>
    %128 = arith.mulf %127, %127 : vector<8x32xf32>
    %cst_82 = arith.constant dense<0.000000e+00> : vector<8xf32>
    %129 = vector.multi_reduction <add>, %128, %cst_82 [1] : vector<8x32xf32> to vector<8xf32>
    %130 = vector.shape_cast %129 : vector<8xf32> to vector<8x1xf32>
    %cst_83 = arith.constant 3.200000e+01 : f32
    %131 = vector.broadcast %cst_83 : f32 to vector<8x1xf32>
    %132 = arith.divf %130, %131 : vector<8x1xf32>
    %133 = vector.broadcast %125 : vector<8x1xf32> to vector<8x32xf32>
    %134 = arith.subf %117, %133 : vector<8x32xf32>
    %cst_84 = arith.constant 9.99999996E-13 : f32
    %135 = vector.broadcast %cst_84 : f32 to vector<8x1xf32>
    %136 = arith.addf %132, %135 : vector<8x1xf32>
    %137 = math.rsqrt %136 : vector<8x1xf32>
    %138 = vector.broadcast %137 : vector<8x1xf32> to vector<8x32xf32>
    %139 = arith.mulf %134, %138 : vector<8x32xf32>
    %140 = vector.broadcast %119 : vector<1x32xf32> to vector<8x32xf32>
    %141 = arith.mulf %139, %140 : vector<8x32xf32>
    %142 = vector.broadcast %121 : vector<1x32xf32> to vector<8x32xf32>
    %143 = arith.addf %141, %142 : vector<8x32xf32>
    %c0_85 = arith.constant 0 : index
    %c0_86 = arith.constant 0 : index
    %144 = vector.load %arg23[%c0_85, %c0_86] : memref<8x32xf32, #tpu.memory_space<vmem>>, vector<8x32xf32>
    tpu.vector_store %arg23[%c0_85, %c0_86], %143 {strides = array<i32>} : memref<8x32xf32, #tpu.memory_space<vmem>>, vector<8x32xf32>,
    %c1_i32 = arith.constant 1 : i32
    %145 = arith.cmpi eq, %arg1, %c1_i32 : i32
    %146 = arith.extui %145 : i1 to i32
    %c0_i32_87 = arith.constant 0 : i32
    %147 = arith.cmpi ne, %146, %c0_i32_87 : i32
    scf.if %147 {
      %cst_88 = arith.constant 0.000000e+00 : f32
      %148 = vector.broadcast %cst_88 : f32 to vector<8x96xf32>
      %149 = tpu.concatenate %143, %148 in 1 : vector<8x32xf32>, vector<8x96xf32> -> vector<8x128xf32>
      %c0_89 = arith.constant 0 : index
      %c0_90 = arith.constant 0 : index
      %c0_91 = arith.constant 0 : index
      %150 = vector.load %arg21[%c0_89, %c0_90, %c0_91] : memref<1x8x128xf32, #tpu.memory_space<vmem>>, vector<1x8x128xf32>
      %151 = vector.shape_cast %150 : vector<1x8x128xf32> to vector<8x128xf32>
      %152 = vector.shape_cast %149 : vector<8x128xf32> to vector<1x8x128xf32>
      tpu.vector_store %arg21[%c0_89, %c0_90, %c0_91], %152 {strides = array<i32>} : memref<1x8x128xf32, #tpu.memory_space<vmem>>, vector<1x8x128xf32>,
      %c0_92 = arith.constant 0 : index
      %c0_93 = arith.constant 0 : index
      %c0_94 = arith.constant 0 : index
      %153 = vector.load %arg4[%c0_92, %c0_93, %c0_94] : memref<1x1x8xi32, #tpu.memory_space<vmem>>, vector<1x1x8xi32>
      %154 = vector.shape_cast %153 : vector<1x1x8xi32> to vector<1x8xi32>
      %155 = tpu.iota {dimensions = array<i32: 0>} : vector<8x8xi32>
      %156 = vector.broadcast %154 : vector<1x8xi32> to vector<8x8xi32>
      %157 = arith.cmpi eq, %155, %156 : vector<8x8xi32>
      %158 = arith.extui %157 : vector<8x8xi1> to vector<8x8xi32>
      %159 = arith.sitofp %158 : vector<8x8xi32> to vector<8x8xf32>
      %160 = arith.truncf %159 : vector<8x8xf32> to vector<8x8xbf16>
      %161 = arith.truncf %143 : vector<8x32xf32> to vector<8x32xbf16>
      %cst_95 = arith.constant dense<0.000000e+00> : vector<8x32xf32>
      %162 = tpu.matmul %160, %161, %cst_95 {dimension_numbers = #tpu.dot_dimension_numbers<[1], [0], [0], [1], [0, 0, 1, 1], [], []>} : vector<8x8xbf16>, vector<8x32xbf16>, vector<8x32xf32> -> vector<8x32xf32>
      %cst_96 = arith.constant dense<0.000000e+00> : vector<8xf32>
      %163 = vector.multi_reduction <add>, %159, %cst_96 [1] : vector<8x8xf32> to vector<8xf32>
      %164 = vector.shape_cast %163 : vector<8xf32> to vector<8x1xf32>
      %cst_97 = arith.constant 1.000000e+00 : f32
      %165 = vector.broadcast %cst_97 : f32 to vector<8x1xf32>
      %166 = arith.maximumf %164, %165 : vector<8x1xf32>
      %167 = tpu.reciprocal %166 {approx = true} : vector<8x1xf32> -> vector<8x1xf32>
      %168 = vector.broadcast %167 : vector<8x1xf32> to vector<8x32xf32>
      %169 = arith.mulf %162, %168 : vector<8x32xf32>
      %cst_98 = arith.constant 0.000000e+00 : f32
      %170 = vector.broadcast %cst_98 : f32 to vector<8x96xf32>
      %171 = tpu.concatenate %169, %170 in 1 : vector<8x32xf32>, vector<8x96xf32> -> vector<8x128xf32>
      %c0_99 = arith.constant 0 : index
      %c0_100 = arith.constant 0 : index
      %c0_101 = arith.constant 0 : index
      %172 = vector.load %arg22[%c0_99, %c0_100, %c0_101] : memref<1x8x128xf32, #tpu.memory_space<vmem>>, vector<1x8x128xf32>
      %173 = vector.shape_cast %172 : vector<1x8x128xf32> to vector<8x128xf32>
      %174 = vector.shape_cast %171 : vector<8x128xf32> to vector<1x8x128xf32>
      tpu.vector_store %arg22[%c0_99, %c0_100, %c0_101], %174 {strides = array<i32>} : memref<1x8x128xf32, #tpu.memory_space<vmem>>, vector<1x8x128xf32>,
    } else {
    }
    return
  }
  func.func @transform_0(%arg0: i32, %arg1: i32) -> (i32, i32, i32) {
    %c0_i32 = arith.constant 0 : i32
    %c0_i32_0 = arith.constant 0 : i32
    %c0_i32_1 = arith.constant 0 : i32
    return %arg0, %c0_i32, %c0_i32_0 : i32, i32, i32
  }
  func.func @transform_1(%arg0: i32, %arg1: i32) -> (i32, i32, i32) {
    %c0_i32 = arith.constant 0 : i32
    %c0_i32_0 = arith.constant 0 : i32
    %c0_i32_1 = arith.constant 0 : i32
    return %arg0, %c0_i32, %c0_i32_0 : i32, i32, i32
  }
  func.func @transform_2(%arg0: i32, %arg1: i32) -> (i32, i32, i32) {
    %c0_i32 = arith.constant 0 : i32
    %c0_i32_0 = arith.constant 0 : i32
    %c0_i32_1 = arith.constant 0 : i32
    return %arg0, %c0_i32, %c0_i32_0 : i32, i32, i32
  }
  func.func @transform_3(%arg0: i32, %arg1: i32) -> (i32, i32, i32, i32) {
    %c0_i32 = arith.constant 0 : i32
    %c0_i32_0 = arith.constant 0 : i32
    %c0_i32_1 = arith.constant 0 : i32
    %c0_i32_2 = arith.constant 0 : i32
    return %arg1, %c0_i32, %c0_i32_0, %c0_i32_1 : i32, i32, i32, i32
  }
  func.func @transform_4(%arg0: i32, %arg1: i32) -> (i32, i32, i32, i32) {
    %c0_i32 = arith.constant 0 : i32
    %c0_i32_0 = arith.constant 0 : i32
    %c0_i32_1 = arith.constant 0 : i32
    %c0_i32_2 = arith.constant 0 : i32
    return %arg1, %c0_i32, %c0_i32_0, %c0_i32_1 : i32, i32, i32, i32
  }
  func.func @transform_5(%arg0: i32, %arg1: i32) -> (i32, i32, i32, i32) {
    %c0_i32 = arith.constant 0 : i32
    %c0_i32_0 = arith.constant 0 : i32
    %c0_i32_1 = arith.constant 0 : i32
    %c0_i32_2 = arith.constant 0 : i32
    return %arg1, %c0_i32, %c0_i32_0, %c0_i32_1 : i32, i32, i32, i32
  }
  func.func @transform_6(%arg0: i32, %arg1: i32) -> (i32, i32, i32, i32) {
    %c0_i32 = arith.constant 0 : i32
    %c0_i32_0 = arith.constant 0 : i32
    %c0_i32_1 = arith.constant 0 : i32
    %c0_i32_2 = arith.constant 0 : i32
    return %arg1, %c0_i32, %c0_i32_0, %c0_i32_1 : i32, i32, i32, i32
  }
  func.func @transform_7(%arg0: i32, %arg1: i32) -> (i32, i32, i32, i32) {
    %c0_i32 = arith.constant 0 : i32
    %c0_i32_0 = arith.constant 0 : i32
    %c0_i32_1 = arith.constant 0 : i32
    %c0_i32_2 = arith.constant 0 : i32
    return %arg1, %c0_i32, %c0_i32_0, %c0_i32_1 : i32, i32, i32, i32
  }
  func.func @transform_8(%arg0: i32, %arg1: i32) -> (i32, i32, i32, i32) {
    %c0_i32 = arith.constant 0 : i32
    %c0_i32_0 = arith.constant 0 : i32
    %c0_i32_1 = arith.constant 0 : i32
    %c0_i32_2 = arith.constant 0 : i32
    return %arg1, %c0_i32, %c0_i32_0, %c0_i32_1 : i32, i32, i32, i32
  }
  func.func @transform_9(%arg0: i32, %arg1: i32) -> (i32, i32, i32, i32) {
    %c0_i32 = arith.constant 0 : i32
    %c0_i32_0 = arith.constant 0 : i32
    %c0_i32_1 = arith.constant 0 : i32
    %c0_i32_2 = arith.constant 0 : i32
    return %arg1, %c0_i32, %c0_i32_0, %c0_i32_1 : i32, i32, i32, i32
  }
  func.func @transform_10(%arg0: i32, %arg1: i32) -> (i32, i32, i32) {
    %c0_i32 = arith.constant 0 : i32
    %c0_i32_0 = arith.constant 0 : i32
    %c0_i32_1 = arith.constant 0 : i32
    return %arg1, %c0_i32, %c0_i32_0 : i32, i32, i32
  }
  func.func @transform_11(%arg0: i32, %arg1: i32) -> (i32, i32, i32) {
    %c0_i32 = arith.constant 0 : i32
    %c0_i32_0 = arith.constant 0 : i32
    %c0_i32_1 = arith.constant 0 : i32
    return %arg1, %c0_i32, %c0_i32_0 : i32, i32, i32
  }
  func.func @transform_12(%arg0: i32, %arg1: i32) -> (i32, i32, i32) {
    %c0_i32 = arith.constant 0 : i32
    %c0_i32_0 = arith.constant 0 : i32
    %c0_i32_1 = arith.constant 0 : i32
    return %arg1, %c0_i32, %c0_i32_0 : i32, i32, i32
  }
  func.func @transform_13(%arg0: i32, %arg1: i32) -> (i32, i32, i32) {
    %c0_i32 = arith.constant 0 : i32
    %c0_i32_0 = arith.constant 0 : i32
    %c0_i32_1 = arith.constant 0 : i32
    return %arg1, %c0_i32, %c0_i32_0 : i32, i32, i32
  }
  func.func @transform_14(%arg0: i32, %arg1: i32) -> (i32, i32, i32) {
    %c0_i32 = arith.constant 0 : i32
    %c0_i32_0 = arith.constant 0 : i32
    %c0_i32_1 = arith.constant 0 : i32
    return %arg1, %c0_i32, %c0_i32_0 : i32, i32, i32
  }
  func.func @transform_15(%arg0: i32, %arg1: i32) -> (i32, i32, i32) {
    %c0_i32 = arith.constant 0 : i32
    %c0_i32_0 = arith.constant 0 : i32
    %c0_i32_1 = arith.constant 0 : i32
    return %arg1, %c0_i32, %c0_i32_0 : i32, i32, i32
  }
  func.func @transform_16(%arg0: i32, %arg1: i32) -> (i32, i32, i32) {
    %c0_i32 = arith.constant 0 : i32
    %c0_i32_0 = arith.constant 0 : i32
    %c0_i32_1 = arith.constant 0 : i32
    return %arg1, %c0_i32, %c0_i32_0 : i32, i32, i32
  }
  func.func @transform_17(%arg0: i32, %arg1: i32) -> (i32, i32, i32) {
    %c0_i32 = arith.constant 0 : i32
    %c0_i32_0 = arith.constant 0 : i32
    %c0_i32_1 = arith.constant 0 : i32
    return %arg1, %c0_i32, %c0_i32_0 : i32, i32, i32
  }
  func.func @transform_18(%arg0: i32, %arg1: i32) -> (i32, i32, i32) {
    %c0_i32 = arith.constant 0 : i32
    %c0_i32_0 = arith.constant 0 : i32
    %c0_i32_1 = arith.constant 0 : i32
    return %arg1, %c0_i32, %c0_i32_0 : i32, i32, i32
  }
  func.func @transform_19(%arg0: i32, %arg1: i32) -> (i32, i32, i32) {
    %c0_i32 = arith.constant 0 : i32
    %c0_i32_0 = arith.constant 0 : i32
    %c0_i32_1 = arith.constant 0 : i32
    return %arg0, %c0_i32, %c0_i32_0 : i32, i32, i32
  }
  func.func @transform_20(%arg0: i32, %arg1: i32) -> (i32, i32, i32) {
    %c0_i32 = arith.constant 0 : i32
    %c0_i32_0 = arith.constant 0 : i32
    %c0_i32_1 = arith.constant 0 : i32
    return %arg0, %c0_i32, %c0_i32_0 : i32, i32, i32
  }
}

</mosaic_0001>

<llo_original>
// kernel: tpu_custom_call.1
$region0: #{tpu_custom_call.1}
  #allocation0 [shape = 'u32[]', space=smem, size = 0x4, offset = 0x4, fixed_abs, tag = 'smem constant byte address 0x4 - core index']
  #allocation1 [shape = 'u32[144,128]{1,0:T(1,128)}', space=vmem, size = 0x12000, scoped, tag = 'internal scratch']
  #allocation2 [shape = 'f32[8,32]{1,0:T(8,128)}', space=vmem, size = 0x1000, scoped, tag = 'scratch operand']
  %s0 = inlined_call_operand.vmem [shape: f32[2,8,32], index: 0, kind: input, shape index: {}]
  %s1 = inlined_call_operand.vmem [shape: f32[2,1,8], index: 1, kind: input, shape index: {}]
  %s2 = inlined_call_operand.vmem [shape: s32[2,1,8], index: 2, kind: input, shape index: {}]
  %s3 = inlined_call_operand.vmem [shape: bf16[2,2,32,16], index: 3, kind: input, shape index: {}]
  %s4 = inlined_call_operand.vmem [shape: f32[2,2,1,16], index: 4, kind: input, shape index: {}]
  %s5 = inlined_call_operand.vmem [shape: bf16[2,2,32,16], index: 5, kind: input, shape index: {}]
  %s6 = inlined_call_operand.vmem [shape: f32[2,2,1,16], index: 6, kind: input, shape index: {}]
  %s7 = inlined_call_operand.vmem [shape: bf16[2,2,32,16], index: 7, kind: input, shape index: {}]
  %s8 = inlined_call_operand.vmem [shape: f32[2,2,1,16], index: 8, kind: input, shape index: {}]
  %s9 = inlined_call_operand.vmem [shape: bf16[2,2,16,32], index: 9, kind: input, shape index: {}]
  %s10 = inlined_call_operand.vmem [shape: f32[2,1,32], index: 10, kind: input, shape index: {}]
  %s11 = inlined_call_operand.vmem [shape: f32[2,1,32], index: 11, kind: input, shape index: {}]
  %s12 = inlined_call_operand.vmem [shape: f32[2,1,32], index: 12, kind: input, shape index: {}]
  %s13 = inlined_call_operand.vmem [shape: bf16[2,32,64], index: 13, kind: input, shape index: {}]
  %s14 = inlined_call_operand.vmem [shape: f32[2,1,64], index: 14, kind: input, shape index: {}]
  %s15 = inlined_call_operand.vmem [shape: bf16[2,64,32], index: 15, kind: input, shape index: {}]
  %s16 = inlined_call_operand.vmem [shape: f32[2,1,32], index: 16, kind: input, shape index: {}]
  %s17 = inlined_call_operand.vmem [shape: f32[2,1,32], index: 17, kind: input, shape index: {}]
  %s18 = inlined_call_operand.vmem [shape: f32[2,1,32], index: 18, kind: input, shape index: {}]
  %s19 = inlined_call_operand.hbm [shape: f32[2,8,128], index: 19, kind: output, shape index: {0}]
  %s20 = inlined_call_operand.hbm [shape: f32[2,8,128], index: 20, kind: output, shape index: {1}]
  %21 = xla_tuple %s19, %s20
  %s22 = sld [smem:[#allocation0]]
  $region125: #{tpu_custom_call.1} parent=0
    _
  %s24 = ssub.s32 1, %s22
  %s25 = scalar_select 0, %s24, %s22
  $region1: #{tpu_custom_call.1} parent=0
    #allocation3 [shape = 'u8[8192]{0}', space=vmem, size = 0x2000, scoped, tag = 'output window, operand 0']
    #allocation4 [shape = 's32[2]{0}', space=sflag, size = 0x8, scoped, tag = 'scoped memory for tpu_custom_call.1']
    #allocation5 [shape = 'u8[8192]{0}', space=vmem, size = 0x2000, scoped, tag = 'output window, operand 1']
    #allocation6 [shape = 's32[2]{0}', space=sflag, size = 0x8, scoped, tag = 'scoped memory for tpu_custom_call.1']
    %26 = vsyncpa [#allocation4], 0
    %s27 = scalar_lea.sflag [#allocation4], 1
    %28 = vsyncpa %s27, 0
    %29 = vsyncpa [#allocation6], 0
    %s30 = scalar_lea.sflag [#allocation6], 1
    %31 = vsyncpa %s30, 0
    loop: start=0, step=1, limit=6
    $region2: #{tpu_custom_call.1} parent=1 // loop_pre_header
      _
    $region3: #{tpu_custom_call.1} parent=1 // loop_header
      %s33 = sphi 0, %s37
      %p34 = scmp.ge.s32.totalorder %s33, 6
      %s40 = sphi 0, %s52
      %s41 = sphi 0, %s48
      %s42 = sphi 0, %s40
      %s43 = sphi 0, %s41
      %s44 = sphi 0, %s42
      %s45 = sphi 0, %s43
      %s55 = sphi 0, %s57
      %s58 = sphi 0, %s55
      %s59 = sphi 0, %s58
      %s75 = sphi 0, %s59
      %s81 = sphi 0, %s83
      %s84 = sphi 0, %s81
      %s85 = sphi 0, %s84
      %s101 = sphi 0, %s85
      %s107 = sphi 0, %s109
      %s110 = sphi 0, %s107
      %s111 = sphi 0, %s110
      %s127 = sphi 0, %s111
      %s133 = sphi 0, %s135
      %s136 = sphi 0, %s133
      %s137 = sphi 0, %s136
      %s153 = sphi 0, %s137
      %s159 = sphi 0, %s161
      %s162 = sphi 0, %s159
      %s163 = sphi 0, %s162
      %s179 = sphi 0, %s163
      %s185 = sphi 0, %s187
      %s188 = sphi 0, %s185
      %s189 = sphi 0, %s188
      %s205 = sphi 0, %s189
      %s211 = sphi 0, %s213
      %s214 = sphi 0, %s211
      %s215 = sphi 0, %s214
      %s231 = sphi 0, %s215
      %s237 = sphi 0, %s239
      %s240 = sphi 0, %s237
      %s241 = sphi 0, %s240
      %s257 = sphi 0, %s241
      %s263 = sphi 0, %s265
      %s266 = sphi 0, %s263
      %s267 = sphi 0, %s266
      %s283 = sphi 0, %s267
      %s289 = sphi 0, %s291
      %s292 = sphi 0, %s289
      %s293 = sphi 0, %s292
      %s309 = sphi 0, %s293
      %s315 = sphi 0, %s317
      %s318 = sphi 0, %s315
      %s319 = sphi 0, %s318
      %s335 = sphi 0, %s319
      %s341 = sphi 0, %s343
      %s344 = sphi 0, %s341
      %s345 = sphi 0, %s344
      %s361 = sphi 0, %s345
      %s367 = sphi 0, %s369
      %s370 = sphi 0, %s367
      %s371 = sphi 0, %s370
      %s387 = sphi 0, %s371
      %s393 = sphi 0, %s395
      %s396 = sphi 0, %s393
      %s397 = sphi 0, %s396
      %s413 = sphi 0, %s397
      %s419 = sphi 0, %s421
      %s422 = sphi 0, %s419
      %s423 = sphi 0, %s422
      %s439 = sphi 0, %s423
      %s445 = sphi 0, %s447
      %s448 = sphi 0, %s445
      %s449 = sphi 0, %s448
      %s465 = sphi 0, %s449
      %s471 = sphi 0, %s473
      %s474 = sphi 0, %s471
      %s475 = sphi 0, %s474
      %s491 = sphi 0, %s475
      %s497 = sphi 0, %s499
      %s500 = sphi 0, %s497
      %s501 = sphi 0, %s500
      %s517 = sphi 0, %s501
      %s523 = sphi 0, %s525
      %s526 = sphi 0, %s523
      %s527 = sphi 0, %s526
      %s543 = sphi 0, %s527
      %s549 = sphi 0, %s551
      %s552 = sphi 0, %s549
      %s553 = sphi 0, %s552
      %s569 = sphi 0, %s553
      %s575 = sphi 0, %s577
      %s578 = sphi 0, %s575
      %s579 = sphi 0, %s578
      %s595 = sphi 0, %s579
    $region4: #{tpu_custom_call.1} parent=1 // loop_header_branch
      %36 = sbr.rel (%p34) target = $region8
    $region5: #{tpu_custom_call.1} parent=1 // loop_body
      %s38 = ssub.s32 %s33, 1
      %s39 = ssub.s32 %s33, 2
      %s46 = sadd.s32 1, %s41
      %p47 = scmp.ge.s32.totalorder %s46, 2
      %s48 = scalar_select %p47, 0, %s46
      %s49 = sadd.s32 1, %s40
      %s50 = scalar_select %p47, %s49, %s40
      %p51 = scmp.ge.s32.totalorder %s50, 2
      %s52 = scalar_select %p51, 0, %s50
      %s53 = ssub.s32 %s40, %s52
      %p54 = scmp.eq.s32.totalorder %s53, 0
      %s56 = sadd.s32 %s55, 1
      %s57 = scalar_select %p54, %s55, %s56
      %p60 = pneg %p54
      %p61 = scmp.eq.s32.totalorder %s33, 3
      %p62 = por %p60, %p61
      %p63 = scmp.ne.s32.totalorder %s55, %s58
      %p64 = scmp.eq.s32.totalorder %s33, 0
      %p65 = por %p63, %p64
      %p66 = scmp.ne.s32.totalorder %s55, %s58
      %p67 = scmp.eq.s32.totalorder %s38, 3
      %p68 = por %p66, %p67
      %p69 = scmp.ne.s32.totalorder %s58, %s59
      %p70 = scmp.eq.s32.totalorder %s38, 0
      %p71 = por %p69, %p70
      %p72 = scmp.ne.s32.totalorder %s58, %s59
      %p73 = scmp.eq.s32.totalorder %s39, 3
      %p74 = por %p72, %p73
      %p76 = scmp.ne.s32.totalorder %s59, %s75
      %p77 = scmp.eq.s32.totalorder %s39, 0
      %p78 = por %p76, %p77
      %s79 = ssub.s32 %s40, %s52
      %p80 = scmp.eq.s32.totalorder %s79, 0
      %s82 = sadd.s32 %s81, 1
      %s83 = scalar_select %p80, %s81, %s82
      %p86 = pneg %p80
      %p87 = scmp.eq.s32.totalorder %s33, 3
      %p88 = por %p86, %p87
      %p89 = scmp.ne.s32.totalorder %s81, %s84
      %p90 = scmp.eq.s32.totalorder %s33, 0
      %p91 = por %p89, %p90
      %p92 = scmp.ne.s32.totalorder %s81, %s84
      %p93 = scmp.eq.s32.totalorder %s38, 3
      %p94 = por %p92, %p93
      %p95 = scmp.ne.s32.totalorder %s84, %s85
      %p96 = scmp.eq.s32.totalorder %s38, 0
      %p97 = por %p95, %p96
      %p98 = scmp.ne.s32.totalorder %s84, %s85
      %p99 = scmp.eq.s32.totalorder %s39, 3
      %p100 = por %p98, %p99
      %p102 = scmp.ne.s32.totalorder %s85, %s101
      %p103 = scmp.eq.s32.totalorder %s39, 0
      %p104 = por %p102, %p103
      %s105 = ssub.s32 %s40, %s52
      %p106 = scmp.eq.s32.totalorder %s105, 0
      %s108 = sadd.s32 %s107, 1
      %s109 = scalar_select %p106, %s107, %s108
      %p112 = pneg %p106
      %p113 = scmp.eq.s32.totalorder %s33, 3
      %p114 = por %p112, %p113
      %p115 = scmp.ne.s32.totalorder %s107, %s110
      %p116 = scmp.eq.s32.totalorder %s33, 0
      %p117 = por %p115, %p116
      %p118 = scmp.ne.s32.totalorder %s107, %s110
      %p119 = scmp.eq.s32.totalorder %s38, 3
      %p120 = por %p118, %p119
      %p121 = scmp.ne.s32.totalorder %s110, %s111
      %p122 = scmp.eq.s32.totalorder %s38, 0
      %p123 = por %p121, %p122
      %p124 = scmp.ne.s32.totalorder %s110, %s111
      %p125 = scmp.eq.s32.totalorder %s39, 3
      %p126 = por %p124, %p125
      %p128 = scmp.ne.s32.totalorder %s111, %s127
      %p129 = scmp.eq.s32.totalorder %s39, 0
      %p130 = por %p128, %p129
      %s131 = ssub.s32 %s41, %s48
      %p132 = scmp.eq.s32.totalorder %s131, 0
      %s134 = sadd.s32 %s133, 1
      %s135 = scalar_select %p132, %s133, %s134
      %p138 = pneg %p132
      %p139 = scmp.eq.s32.totalorder %s33, 3
      %p140 = por %p138, %p139
      %p141 = scmp.ne.s32.totalorder %s133, %s136
      %p142 = scmp.eq.s32.totalorder %s33, 0
      %p143 = por %p141, %p142
      %p144 = scmp.ne.s32.totalorder %s133, %s136
      %p145 = scmp.eq.s32.totalorder %s38, 3
      %p146 = por %p144, %p145
      %p147 = scmp.ne.s32.totalorder %s136, %s137
      %p148 = scmp.eq.s32.totalorder %s38, 0
      %p149 = por %p147, %p148
      %p150 = scmp.ne.s32.totalorder %s136, %s137
      %p151 = scmp.eq.s32.totalorder %s39, 3
      %p152 = por %p150, %p151
      %p154 = scmp.ne.s32.totalorder %s137, %s153
      %p155 = scmp.eq.s32.totalorder %s39, 0
      %p156 = por %p154, %p155
      %s157 = ssub.s32 %s41, %s48
      %p158 = scmp.eq.s32.totalorder %s157, 0
      %s160 = sadd.s32 %s159, 1
      %s161 = scalar_select %p158, %s159, %s160
      %p164 = pneg %p158
      %p165 = scmp.eq.s32.totalorder %s33, 3
      %p166 = por %p164, %p165
      %p167 = scmp.ne.s32.totalorder %s159, %s162
      %p168 = scmp.eq.s32.totalorder %s33, 0
      %p169 = por %p167, %p168
      %p170 = scmp.ne.s32.totalorder %s159, %s162
      %p171 = scmp.eq.s32.totalorder %s38, 3
      %p172 = por %p170, %p171
      %p173 = scmp.ne.s32.totalorder %s162, %s163
      %p174 = scmp.eq.s32.totalorder %s38, 0
      %p175 = por %p173, %p174
      %p176 = scmp.ne.s32.totalorder %s162, %s163
      %p177 = scmp.eq.s32.totalorder %s39, 3
      %p178 = por %p176, %p177
      %p180 = scmp.ne.s32.totalorder %s163, %s179
      %p181 = scmp.eq.s32.totalorder %s39, 0
      %p182 = por %p180, %p181
      %s183 = ssub.s32 %s41, %s48
      %p184 = scmp.eq.s32.totalorder %s183, 0
      %s186 = sadd.s32 %s185, 1
      %s187 = scalar_select %p184, %s185, %s186
      %p190 = pneg %p184
      %p191 = scmp.eq.s32.totalorder %s33, 3
      %p192 = por %p190, %p191
      %p193 = scmp.ne.s32.totalorder %s185, %s188
      %p194 = scmp.eq.s32.totalorder %s33, 0
      %p195 = por %p193, %p194
      %p196 = scmp.ne.s32.totalorder %s185, %s188
      %p197 = scmp.eq.s32.totalorder %s38, 3
      %p198 = por %p196, %p197
      %p199 = scmp.ne.s32.totalorder %s188, %s189
      %p200 = scmp.eq.s32.totalorder %s38, 0
      %p201 = por %p199, %p200
      %p202 = scmp.ne.s32.totalorder %s188, %s189
      %p203 = scmp.eq.s32.totalorder %s39, 3
      %p204 = por %p202, %p203
      %p206 = scmp.ne.s32.totalorder %s189, %s205
      %p207 = scmp.eq.s32.totalorder %s39, 0
      %p208 = por %p206, %p207
      %s209 = ssub.s32 %s41, %s48
      %p210 = scmp.eq.s32.totalorder %s209, 0
      %s212 = sadd.s32 %s211, 1
      %s213 = scalar_select %p210, %s211, %s212
      %p216 = pneg %p210
      %p217 = scmp.eq.s32.totalorder %s33, 3
      %p218 = por %p216, %p217
      %p219 = scmp.ne.s32.totalorder %s211, %s214
      %p220 = scmp.eq.s32.totalorder %s33, 0
      %p221 = por %p219, %p220
      %p222 = scmp.ne.s32.totalorder %s211, %s214
      %p223 = scmp.eq.s32.totalorder %s38, 3
      %p224 = por %p222, %p223
      %p225 = scmp.ne.s32.totalorder %s214, %s215
      %p226 = scmp.eq.s32.totalorder %s38, 0
      %p227 = por %p225, %p226
      %p228 = scmp.ne.s32.totalorder %s214, %s215
      %p229 = scmp.eq.s32.totalorder %s39, 3
      %p230 = por %p228, %p229
      %p232 = scmp.ne.s32.totalorder %s215, %s231
      %p233 = scmp.eq.s32.totalorder %s39, 0
      %p234 = por %p232, %p233
      %s235 = ssub.s32 %s41, %s48
      %p236 = scmp.eq.s32.totalorder %s235, 0
      %s238 = sadd.s32 %s237, 1
      %s239 = scalar_select %p236, %s237, %s238
      %p242 = pneg %p236
      %p243 = scmp.eq.s32.totalorder %s33, 3
      %p244 = por %p242, %p243
      %p245 = scmp.ne.s32.totalorder %s237, %s240
      %p246 = scmp.eq.s32.totalorder %s33, 0
      %p247 = por %p245, %p246
      %p248 = scmp.ne.s32.totalorder %s237, %s240
      %p249 = scmp.eq.s32.totalorder %s38, 3
      %p250 = por %p248, %p249
      %p251 = scmp.ne.s32.totalorder %s240, %s241
      %p252 = scmp.eq.s32.totalorder %s38, 0
      %p253 = por %p251, %p252
      %p254 = scmp.ne.s32.totalorder %s240, %s241
      %p255 = scmp.eq.s32.totalorder %s39, 3
      %p256 = por %p254, %p255
      %p258 = scmp.ne.s32.totalorder %s241, %s257
      %p259 = scmp.eq.s32.totalorder %s39, 0
      %p260 = por %p258, %p259
      %s261 = ssub.s32 %s41, %s48
      %p262 = scmp.eq.s32.totalorder %s261, 0
      %s264 = sadd.s32 %s263, 1
      %s265 = scalar_select %p262, %s263, %s264
      %p268 = pneg %p262
      %p269 = scmp.eq.s32.totalorder %s33, 3
      %p270 = por %p268, %p269
      %p271 = scmp.ne.s32.totalorder %s263, %s266
      %p272 = scmp.eq.s32.totalorder %s33, 0
      %p273 = por %p271, %p272
      %p274 = scmp.ne.s32.totalorder %s263, %s266
      %p275 = scmp.eq.s32.totalorder %s38, 3
      %p276 = por %p274, %p275
      %p277 = scmp.ne.s32.totalorder %s266, %s267
      %p278 = scmp.eq.s32.totalorder %s38, 0
      %p279 = por %p277, %p278
      %p280 = scmp.ne.s32.totalorder %s266, %s267
      %p281 = scmp.eq.s32.totalorder %s39, 3
      %p282 = por %p280, %p281
      %p284 = scmp.ne.s32.totalorder %s267, %s283
      %p285 = scmp.eq.s32.totalorder %s39, 0
      %p286 = por %p284, %p285
      %s287 = ssub.s32 %s41, %s48
      %p288 = scmp.eq.s32.totalorder %s287, 0
      %s290 = sadd.s32 %s289, 1
      %s291 = scalar_select %p288, %s289, %s290
      %p294 = pneg %p288
      %p295 = scmp.eq.s32.totalorder %s33, 3
      %p296 = por %p294, %p295
      %p297 = scmp.ne.s32.totalorder %s289, %s292
      %p298 = scmp.eq.s32.totalorder %s33, 0
      %p299 = por %p297, %p298
      %p300 = scmp.ne.s32.totalorder %s289, %s292
      %p301 = scmp.eq.s32.totalorder %s38, 3
      %p302 = por %p300, %p301
      %p303 = scmp.ne.s32.totalorder %s292, %s293
      %p304 = scmp.eq.s32.totalorder %s38, 0
      %p305 = por %p303, %p304
      %p306 = scmp.ne.s32.totalorder %s292, %s293
      %p307 = scmp.eq.s32.totalorder %s39, 3
      %p308 = por %p306, %p307
      %p310 = scmp.ne.s32.totalorder %s293, %s309
      %p311 = scmp.eq.s32.totalorder %s39, 0
      %p312 = por %p310, %p311
      %s313 = ssub.s32 %s41, %s48
      %p314 = scmp.eq.s32.totalorder %s313, 0
      %s316 = sadd.s32 %s315, 1
      %s317 = scalar_select %p314, %s315, %s316
      %p320 = pneg %p314
      %p321 = scmp.eq.s32.totalorder %s33, 3
      %p322 = por %p320, %p321
      %p323 = scmp.ne.s32.totalorder %s315, %s318
      %p324 = scmp.eq.s32.totalorder %s33, 0
      %p325 = por %p323, %p324
      %p326 = scmp.ne.s32.totalorder %s315, %s318
      %p327 = scmp.eq.s32.totalorder %s38, 3
      %p328 = por %p326, %p327
      %p329 = scmp.ne.s32.totalorder %s318, %s319
      %p330 = scmp.eq.s32.totalorder %s38, 0
      %p331 = por %p329, %p330
      %p332 = scmp.ne.s32.totalorder %s318, %s319
      %p333 = scmp.eq.s32.totalorder %s39, 3
      %p334 = por %p332, %p333
      %p336 = scmp.ne.s32.totalorder %s319, %s335
      %p337 = scmp.eq.s32.totalorder %s39, 0
      %p338 = por %p336, %p337
      %s339 = ssub.s32 %s41, %s48
      %p340 = scmp.eq.s32.totalorder %s339, 0
      %s342 = sadd.s32 %s341, 1
      %s343 = scalar_select %p340, %s341, %s342
      %p346 = pneg %p340
      %p347 = scmp.eq.s32.totalorder %s33, 3
      %p348 = por %p346, %p347
      %p349 = scmp.ne.s32.totalorder %s341, %s344
      %p350 = scmp.eq.s32.totalorder %s33, 0
      %p351 = por %p349, %p350
      %p352 = scmp.ne.s32.totalorder %s341, %s344
      %p353 = scmp.eq.s32.totalorder %s38, 3
      %p354 = por %p352, %p353
      %p355 = scmp.ne.s32.totalorder %s344, %s345
      %p356 = scmp.eq.s32.totalorder %s38, 0
      %p357 = por %p355, %p356
      %p358 = scmp.ne.s32.totalorder %s344, %s345
      %p359 = scmp.eq.s32.totalorder %s39, 3
      %p360 = por %p358, %p359
      %p362 = scmp.ne.s32.totalorder %s345, %s361
      %p363 = scmp.eq.s32.totalorder %s39, 0
      %p364 = por %p362, %p363
      %s365 = ssub.s32 %s41, %s48
      %p366 = scmp.eq.s32.totalorder %s365, 0
      %s368 = sadd.s32 %s367, 1
      %s369 = scalar_select %p366, %s367, %s368
      %p372 = pneg %p366
      %p373 = scmp.eq.s32.totalorder %s33, 3
      %p374 = por %p372, %p373
      %p375 = scmp.ne.s32.totalorder %s367, %s370
      %p376 = scmp.eq.s32.totalorder %s33, 0
      %p377 = por %p375, %p376
      %p378 = scmp.ne.s32.totalorder %s367, %s370
      %p379 = scmp.eq.s32.totalorder %s38, 3
      %p380 = por %p378, %p379
      %p381 = scmp.ne.s32.totalorder %s370, %s371
      %p382 = scmp.eq.s32.totalorder %s38, 0
      %p383 = por %p381, %p382
      %p384 = scmp.ne.s32.totalorder %s370, %s371
      %p385 = scmp.eq.s32.totalorder %s39, 3
      %p386 = por %p384, %p385
      %p388 = scmp.ne.s32.totalorder %s371, %s387
      %p389 = scmp.eq.s32.totalorder %s39, 0
      %p390 = por %p388, %p389
      %s391 = ssub.s32 %s41, %s48
      %p392 = scmp.eq.s32.totalorder %s391, 0
      %s394 = sadd.s32 %s393, 1
      %s395 = scalar_select %p392, %s393, %s394
      %p398 = pneg %p392
      %p399 = scmp.eq.s32.totalorder %s33, 3
      %p400 = por %p398, %p399
      %p401 = scmp.ne.s32.totalorder %s393, %s396
      %p402 = scmp.eq.s32.totalorder %s33, 0
      %p403 = por %p401, %p402
      %p404 = scmp.ne.s32.totalorder %s393, %s396
      %p405 = scmp.eq.s32.totalorder %s38, 3
      %p406 = por %p404, %p405
      %p407 = scmp.ne.s32.totalorder %s396, %s397
      %p408 = scmp.eq.s32.totalorder %s38, 0
      %p409 = por %p407, %p408
      %p410 = scmp.ne.s32.totalorder %s396, %s397
      %p411 = scmp.eq.s32.totalorder %s39, 3
      %p412 = por %p410, %p411
      %p414 = scmp.ne.s32.totalorder %s397, %s413
      %p415 = scmp.eq.s32.totalorder %s39, 0
      %p416 = por %p414, %p415
      %s417 = ssub.s32 %s41, %s48
      %p418 = scmp.eq.s32.totalorder %s417, 0
      %s420 = sadd.s32 %s419, 1
      %s421 = scalar_select %p418, %s419, %s420
      %p424 = pneg %p418
      %p425 = scmp.eq.s32.totalorder %s33, 3
      %p426 = por %p424, %p425
      %p427 = scmp.ne.s32.totalorder %s419, %s422
      %p428 = scmp.eq.s32.totalorder %s33, 0
      %p429 = por %p427, %p428
      %p430 = scmp.ne.s32.totalorder %s419, %s422
      %p431 = scmp.eq.s32.totalorder %s38, 3
      %p432 = por %p430, %p431
      %p433 = scmp.ne.s32.totalorder %s422, %s423
      %p434 = scmp.eq.s32.totalorder %s38, 0
      %p435 = por %p433, %p434
      %p436 = scmp.ne.s32.totalorder %s422, %s423
      %p437 = scmp.eq.s32.totalorder %s39, 3
      %p438 = por %p436, %p437
      %p440 = scmp.ne.s32.totalorder %s423, %s439
      %p441 = scmp.eq.s32.totalorder %s39, 0
      %p442 = por %p440, %p441
      %s443 = ssub.s32 %s41, %s48
      %p444 = scmp.eq.s32.totalorder %s443, 0
      %s446 = sadd.s32 %s445, 1
      %s447 = scalar_select %p444, %s445, %s446
      %p450 = pneg %p444
      %p451 = scmp.eq.s32.totalorder %s33, 3
      %p452 = por %p450, %p451
      %p453 = scmp.ne.s32.totalorder %s445, %s448
      %p454 = scmp.eq.s32.totalorder %s33, 0
      %p455 = por %p453, %p454
      %p456 = scmp.ne.s32.totalorder %s445, %s448
      %p457 = scmp.eq.s32.totalorder %s38, 3
      %p458 = por %p456, %p457
      %p459 = scmp.ne.s32.totalorder %s448, %s449
      %p460 = scmp.eq.s32.totalorder %s38, 0
      %p461 = por %p459, %p460
      %p462 = scmp.ne.s32.totalorder %s448, %s449
      %p463 = scmp.eq.s32.totalorder %s39, 3
      %p464 = por %p462, %p463
      %p466 = scmp.ne.s32.totalorder %s449, %s465
      %p467 = scmp.eq.s32.totalorder %s39, 0
      %p468 = por %p466, %p467
      %s469 = ssub.s32 %s41, %s48
      %p470 = scmp.eq.s32.totalorder %s469, 0
      %s472 = sadd.s32 %s471, 1
      %s473 = scalar_select %p470, %s471, %s472
      %p476 = pneg %p470
      %p477 = scmp.eq.s32.totalorder %s33, 3
      %p478 = por %p476, %p477
      %p479 = scmp.ne.s32.totalorder %s471, %s474
      %p480 = scmp.eq.s32.totalorder %s33, 0
      %p481 = por %p479, %p480
      %p482 = scmp.ne.s32.totalorder %s471, %s474
      %p483 = scmp.eq.s32.totalorder %s38, 3
      %p484 = por %p482, %p483
      %p485 = scmp.ne.s32.totalorder %s474, %s475
      %p486 = scmp.eq.s32.totalorder %s38, 0
      %p487 = por %p485, %p486
      %p488 = scmp.ne.s32.totalorder %s474, %s475
      %p489 = scmp.eq.s32.totalorder %s39, 3
      %p490 = por %p488, %p489
      %p492 = scmp.ne.s32.totalorder %s475, %s491
      %p493 = scmp.eq.s32.totalorder %s39, 0
      %p494 = por %p492, %p493
      %s495 = ssub.s32 %s41, %s48
      %p496 = scmp.eq.s32.totalorder %s495, 0
      %s498 = sadd.s32 %s497, 1
      %s499 = scalar_select %p496, %s497, %s498
      %p502 = pneg %p496
      %p503 = scmp.eq.s32.totalorder %s33, 3
      %p504 = por %p502, %p503
      %p505 = scmp.ne.s32.totalorder %s497, %s500
      %p506 = scmp.eq.s32.totalorder %s33, 0
      %p507 = por %p505, %p506
      %p508 = scmp.ne.s32.totalorder %s497, %s500
      %p509 = scmp.eq.s32.totalorder %s38, 3
      %p510 = por %p508, %p509
      %p511 = scmp.ne.s32.totalorder %s500, %s501
      %p512 = scmp.eq.s32.totalorder %s38, 0
      %p513 = por %p511, %p512
      %p514 = scmp.ne.s32.totalorder %s500, %s501
      %p515 = scmp.eq.s32.totalorder %s39, 3
      %p516 = por %p514, %p515
      %p518 = scmp.ne.s32.totalorder %s501, %s517
      %p519 = scmp.eq.s32.totalorder %s39, 0
      %p520 = por %p518, %p519
      %s521 = ssub.s32 %s41, %s48
      %p522 = scmp.eq.s32.totalorder %s521, 0
      %s524 = sadd.s32 %s523, 1
      %s525 = scalar_select %p522, %s523, %s524
      %p528 = pneg %p522
      %p529 = scmp.eq.s32.totalorder %s33, 3
      %p530 = por %p528, %p529
      %p531 = scmp.ne.s32.totalorder %s523, %s526
      %p532 = scmp.eq.s32.totalorder %s33, 0
      %p533 = por %p531, %p532
      %p534 = scmp.ne.s32.totalorder %s523, %s526
      %p535 = scmp.eq.s32.totalorder %s38, 3
      %p536 = por %p534, %p535
      %p537 = scmp.ne.s32.totalorder %s526, %s527
      %p538 = scmp.eq.s32.totalorder %s38, 0
      %p539 = por %p537, %p538
      %p540 = scmp.ne.s32.totalorder %s526, %s527
      %p541 = scmp.eq.s32.totalorder %s39, 3
      %p542 = por %p540, %p541
      %p544 = scmp.ne.s32.totalorder %s527, %s543
      %p545 = scmp.eq.s32.totalorder %s39, 0
      %p546 = por %p544, %p545
      %s547 = ssub.s32 %s40, %s52
      %p548 = scmp.eq.s32.totalorder %s547, 0
      %s550 = sadd.s32 %s549, 1
      %s551 = scalar_select %p548, %s549, %s550
      %p554 = pneg %p548
      %p555 = scmp.eq.s32.totalorder %s33, 3
      %p556 = por %p554, %p555
      %p557 = scmp.ne.s32.totalorder %s549, %s552
      %p558 = scmp.eq.s32.totalorder %s33, 0
      %p559 = por %p557, %p558
      %p560 = scmp.ne.s32.totalorder %s549, %s552
      %p561 = scmp.eq.s32.totalorder %s38, 3
      %p562 = por %p560, %p561
      %p563 = scmp.ne.s32.totalorder %s552, %s553
      %p564 = scmp.eq.s32.totalorder %s38, 0
      %p565 = por %p563, %p564
      %p566 = scmp.ne.s32.totalorder %s552, %s553
      %p567 = scmp.eq.s32.totalorder %s39, 3
      %p568 = por %p566, %p567
      %p570 = scmp.ne.s32.totalorder %s553, %s569
      %p571 = scmp.eq.s32.totalorder %s39, 0
      %p572 = por %p570, %p571
      %s573 = ssub.s32 %s40, %s52
      %p574 = scmp.eq.s32.totalorder %s573, 0
      %s576 = sadd.s32 %s575, 1
      %s577 = scalar_select %p574, %s575, %s576
      %p580 = pneg %p574
      %p581 = scmp.eq.s32.totalorder %s33, 3
      %p582 = por %p580, %p581
      %p583 = scmp.ne.s32.totalorder %s575, %s578
      %p584 = scmp.eq.s32.totalorder %s33, 0
      %p585 = por %p583, %p584
      %p586 = scmp.ne.s32.totalorder %s575, %s578
      %p587 = scmp.eq.s32.totalorder %s38, 3
      %p588 = por %p586, %p587
      %p589 = scmp.ne.s32.totalorder %s578, %s579
      %p590 = scmp.eq.s32.totalorder %s38, 0
      %p591 = por %p589, %p590
      %p592 = scmp.ne.s32.totalorder %s578, %s579
      %p593 = scmp.eq.s32.totalorder %s39, 3
      %p594 = por %p592, %p593
      %p596 = scmp.ne.s32.totalorder %s579, %s595
      %p597 = scmp.eq.s32.totalorder %s39, 0
      %p598 = por %p596, %p597
      %p599 = scmp.le.s32.totalorder 1, %s33
      %p600 = scmp.lt.s32.totalorder %s33, 5
      %p601 = pnand %p599, %p600
      %p602 = pneg %p601
      // Predicated region
      $region9: #{tpu_custom_call.1} parent=5 // pred_check
        _
      $region10: #{tpu_custom_call.1} parent=5 // pred_check_branch
        %604 = sbr.rel (%p601) target = $region12
      $region11: #{tpu_custom_call.1} parent=5 // pred_region
        %s605 = ssub.s32 %s33, 1
      $region12: #{tpu_custom_call.1} parent=5 // pred_fallthru
        _
      %p606 = scmp.lt.s32.totalorder %s33, 4
      // Predicated region
      $region13: #{tpu_custom_call.1} parent=5 // pred_check
        %p607 = pneg %p606
      $region14: #{tpu_custom_call.1} parent=5 // pred_check_branch
        %609 = sbr.rel (%p607) target = $region16
      $region15: #{tpu_custom_call.1} parent=5 // pred_region
        // Predicated region
        $region17: #{tpu_custom_call.1} parent=15 // pred_check
          %p610 = pneg %p65
        $region18: #{tpu_custom_call.1} parent=15 // pred_check_branch
          %612 = sbr.rel (%p610) target = $region20
        $region19: #{tpu_custom_call.1} parent=15 // pred_region
          %p613 = scmp.lt.s32.totalorder %s40, 1
          %s614 = scalar_select %p613, %s40, 1
          %s615 = smul.addr %s614, 8
          %s616 = scalar_lea.vmem %s0, %s615
        $region20: #{tpu_custom_call.1} parent=15 // pred_fallthru
          _
        // Predicated region
        $region21: #{tpu_custom_call.1} parent=15 // pred_check
          %p617 = pneg %p91
        $region22: #{tpu_custom_call.1} parent=15 // pred_check_branch
          %619 = sbr.rel (%p617) target = $region24
        $region23: #{tpu_custom_call.1} parent=15 // pred_region
          %p620 = scmp.lt.s32.totalorder %s40, 1
          %s621 = scalar_select %p620, %s40, 1
          %s622 = scalar_lea.vmem %s1, %s621
        $region24: #{tpu_custom_call.1} parent=15 // pred_fallthru
          _
        // Predicated region
        $region25: #{tpu_custom_call.1} parent=15 // pred_check
          %p623 = pneg %p117
        $region26: #{tpu_custom_call.1} parent=15 // pred_check_branch
          %625 = sbr.rel (%p623) target = $region28
        $region27: #{tpu_custom_call.1} parent=15 // pred_region
          %p626 = scmp.lt.s32.totalorder %s40, 1
          %s627 = scalar_select %p626, %s40, 1
          %s628 = scalar_lea.vmem %s2, %s627
        $region28: #{tpu_custom_call.1} parent=15 // pred_fallthru
          _
        // Predicated region
        $region29: #{tpu_custom_call.1} parent=15 // pred_check
          %p629 = pneg %p143
        $region30: #{tpu_custom_call.1} parent=15 // pred_check_branch
          %631 = sbr.rel (%p629) target = $region32
        $region31: #{tpu_custom_call.1} parent=15 // pred_region
          %p632 = scmp.lt.s32.totalorder %s41, 1
          %s633 = scalar_select %p632, %s41, 1
          %s634 = smul.addr %s633, 8
          %s635 = smul.addr %s634, 4
          %s636 = scalar_lea.vmem %s3, %s635
        $region32: #{tpu_custom_call.1} parent=15 // pred_fallthru
          _
        // Predicated region
        $region33: #{tpu_custom_call.1} parent=15 // pred_check
          %p637 = pneg %p169
        $region34: #{tpu_custom_call.1} parent=15 // pred_check_branch
          %639 = sbr.rel (%p637) target = $region36
        $region35: #{tpu_custom_call.1} parent=15 // pred_region
          %p640 = scmp.lt.s32.totalorder %s41, 1
          %s641 = scalar_select %p640, %s41, 1
          %s642 = smul.addr %s641, 2
          %s643 = scalar_lea.vmem %s4, %s642
        $region36: #{tpu_custom_call.1} parent=15 // pred_fallthru
          _
        // Predicated region
        $region37: #{tpu_custom_call.1} parent=15 // pred_check
          %p644 = pneg %p195
        $region38: #{tpu_custom_call.1} parent=15 // pred_check_branch
          %646 = sbr.rel (%p644) target = $region40
        $region39: #{tpu_custom_call.1} parent=15 // pred_region
          %p647 = scmp.lt.s32.totalorder %s41, 1
          %s648 = scalar_select %p647, %s41, 1
          %s649 = smul.addr %s648, 8
          %s650 = smul.addr %s649, 4
          %s651 = scalar_lea.vmem %s5, %s650
        $region40: #{tpu_custom_call.1} parent=15 // pred_fallthru
          _
        // Predicated region
        $region41: #{tpu_custom_call.1} parent=15 // pred_check
          %p652 = pneg %p221
        $region42: #{tpu_custom_call.1} parent=15 // pred_check_branch
          %654 = sbr.rel (%p652) target = $region44
        $region43: #{tpu_custom_call.1} parent=15 // pred_region
          %p655 = scmp.lt.s32.totalorder %s41, 1
          %s656 = scalar_select %p655, %s41, 1
          %s657 = smul.addr %s656, 2
          %s658 = scalar_lea.vmem %s6, %s657
        $region44: #{tpu_custom_call.1} parent=15 // pred_fallthru
          _
        // Predicated region
        $region45: #{tpu_custom_call.1} parent=15 // pred_check
          %p659 = pneg %p247
        $region46: #{tpu_custom_call.1} parent=15 // pred_check_branch
          %661 = sbr.rel (%p659) target = $region48
        $region47: #{tpu_custom_call.1} parent=15 // pred_region
          %p662 = scmp.lt.s32.totalorder %s41, 1
          %s663 = scalar_select %p662, %s41, 1
          %s664 = smul.addr %s663, 8
          %s665 = smul.addr %s664, 4
          %s666 = scalar_lea.vmem %s7, %s665
        $region48: #{tpu_custom_call.1} parent=15 // pred_fallthru
          _
        // Predicated region
        $region49: #{tpu_custom_call.1} parent=15 // pred_check
          %p667 = pneg %p273
        $region50: #{tpu_custom_call.1} parent=15 // pred_check_branch
          %669 = sbr.rel (%p667) target = $region52
        $region51: #{tpu_custom_call.1} parent=15 // pred_region
          %p670 = scmp.lt.s32.totalorder %s41, 1
          %s671 = scalar_select %p670, %s41, 1
          %s672 = smul.addr %s671, 2
          %s673 = scalar_lea.vmem %s8, %s672
        $region52: #{tpu_custom_call.1} parent=15 // pred_fallthru
          _
        // Predicated region
        $region53: #{tpu_custom_call.1} parent=15 // pred_check
          %p674 = pneg %p299
        $region54: #{tpu_custom_call.1} parent=15 // pred_check_branch
          %676 = sbr.rel (%p674) target = $region56
        $region55: #{tpu_custom_call.1} parent=15 // pred_region
          %p677 = scmp.lt.s32.totalorder %s41, 1
          %s678 = scalar_select %p677, %s41, 1
          %s679 = smul.addr %s678, 4
          %s680 = smul.addr %s679, 4
          %s681 = scalar_lea.vmem %s9, %s680
        $region56: #{tpu_custom_call.1} parent=15 // pred_fallthru
          _
        // Predicated region
        $region57: #{tpu_custom_call.1} parent=15 // pred_check
          %p682 = pneg %p325
        $region58: #{tpu_custom_call.1} parent=15 // pred_check_branch
          %684 = sbr.rel (%p682) target = $region60
        $region59: #{tpu_custom_call.1} parent=15 // pred_region
          %p685 = scmp.lt.s32.totalorder %s41, 1
          %s686 = scalar_select %p685, %s41, 1
          %s687 = scalar_lea.vmem %s10, %s686
        $region60: #{tpu_custom_call.1} parent=15 // pred_fallthru
          _
        // Predicated region
        $region61: #{tpu_custom_call.1} parent=15 // pred_check
          %p688 = pneg %p351
        $region62: #{tpu_custom_call.1} parent=15 // pred_check_branch
          %690 = sbr.rel (%p688) target = $region64
        $region63: #{tpu_custom_call.1} parent=15 // pred_region
          %p691 = scmp.lt.s32.totalorder %s41, 1
          %s692 = scalar_select %p691, %s41, 1
          %s693 = scalar_lea.vmem %s11, %s692
        $region64: #{tpu_custom_call.1} parent=15 // pred_fallthru
          _
        // Predicated region
        $region65: #{tpu_custom_call.1} parent=15 // pred_check
          %p694 = pneg %p377
        $region66: #{tpu_custom_call.1} parent=15 // pred_check_branch
          %696 = sbr.rel (%p694) target = $region68
        $region67: #{tpu_custom_call.1} parent=15 // pred_region
          %p697 = scmp.lt.s32.totalorder %s41, 1
          %s698 = scalar_select %p697, %s41, 1
          %s699 = scalar_lea.vmem %s12, %s698
        $region68: #{tpu_custom_call.1} parent=15 // pred_fallthru
          _
        // Predicated region
        $region69: #{tpu_custom_call.1} parent=15 // pred_check
          %p700 = pneg %p403
        $region70: #{tpu_custom_call.1} parent=15 // pred_check_branch
          %702 = sbr.rel (%p700) target = $region72
        $region71: #{tpu_custom_call.1} parent=15 // pred_region
          %p703 = scmp.lt.s32.totalorder %s41, 1
          %s704 = scalar_select %p703, %s41, 1
          %s705 = smul.addr %s704, 4
          %s706 = smul.addr %s705, 4
          %s707 = scalar_lea.vmem %s13, %s706
        $region72: #{tpu_custom_call.1} parent=15 // pred_fallthru
          _
        // Predicated region
        $region73: #{tpu_custom_call.1} parent=15 // pred_check
          %p708 = pneg %p429
        $region74: #{tpu_custom_call.1} parent=15 // pred_check_branch
          %710 = sbr.rel (%p708) target = $region76
        $region75: #{tpu_custom_call.1} parent=15 // pred_region
          %p711 = scmp.lt.s32.totalorder %s41, 1
          %s712 = scalar_select %p711, %s41, 1
          %s713 = scalar_lea.vmem %s14, %s712
        $region76: #{tpu_custom_call.1} parent=15 // pred_fallthru
          _
        // Predicated region
        $region77: #{tpu_custom_call.1} parent=15 // pred_check
          %p714 = pneg %p455
        $region78: #{tpu_custom_call.1} parent=15 // pred_check_branch
          %716 = sbr.rel (%p714) target = $region80
        $region79: #{tpu_custom_call.1} parent=15 // pred_region
          %p717 = scmp.lt.s32.totalorder %s41, 1
          %s718 = scalar_select %p717, %s41, 1
          %s719 = smul.addr %s718, 8
          %s720 = smul.addr %s719, 4
          %s721 = scalar_lea.vmem %s15, %s720
        $region80: #{tpu_custom_call.1} parent=15 // pred_fallthru
          _
        // Predicated region
        $region81: #{tpu_custom_call.1} parent=15 // pred_check
          %p722 = pneg %p481
        $region82: #{tpu_custom_call.1} parent=15 // pred_check_branch
          %724 = sbr.rel (%p722) target = $region84
        $region83: #{tpu_custom_call.1} parent=15 // pred_region
          %p725 = scmp.lt.s32.totalorder %s41, 1
          %s726 = scalar_select %p725, %s41, 1
          %s727 = scalar_lea.vmem %s16, %s726
        $region84: #{tpu_custom_call.1} parent=15 // pred_fallthru
          _
        // Predicated region
        $region85: #{tpu_custom_call.1} parent=15 // pred_check
          %p728 = pneg %p507
        $region86: #{tpu_custom_call.1} parent=15 // pred_check_branch
          %730 = sbr.rel (%p728) target = $region88
        $region87: #{tpu_custom_call.1} parent=15 // pred_region
          %p731 = scmp.lt.s32.totalorder %s41, 1
          %s732 = scalar_select %p731, %s41, 1
          %s733 = scalar_lea.vmem %s17, %s732
        $region88: #{tpu_custom_call.1} parent=15 // pred_fallthru
          _
        // Predicated region
        $region89: #{tpu_custom_call.1} parent=15 // pred_check
          %p734 = pneg %p533
        $region90: #{tpu_custom_call.1} parent=15 // pred_check_branch
          %736 = sbr.rel (%p734) target = $region92
        $region91: #{tpu_custom_call.1} parent=15 // pred_region
          %p737 = scmp.lt.s32.totalorder %s41, 1
          %s738 = scalar_select %p737, %s41, 1
          %s739 = scalar_lea.vmem %s18, %s738
        $region92: #{tpu_custom_call.1} parent=15 // pred_fallthru
          _
      $region16: #{tpu_custom_call.1} parent=5 // pred_fallthru
        _
      %p740 = scmp.le.s32.totalorder 1, %s33
      %p741 = scmp.lt.s32.totalorder %s33, 5
      %p742 = pnand %p740, %p741
      %p743 = pneg %p742
      // Predicated region
      $region93: #{tpu_custom_call.1} parent=5 // pred_check
        _
      $region94: #{tpu_custom_call.1} parent=5 // pred_check_branch
        %745 = sbr.rel (%p742) target = $region96
      $region95: #{tpu_custom_call.1} parent=5 // pred_region
        %s746 = ssub.s32 %s33, 1
        %p747 = scmp.lt.s32.totalorder %s42, 1
        %s748 = scalar_select %p747, %s42, 1
        %s749 = smul.addr %s748, 8
        %s750 = scalar_lea.vmem %s0, %s749
        %p751 = pneg %p71
        %p752 = pneg %p68
        %p753 = scmp.lt.s32.totalorder %s42, 1
        %s754 = scalar_select %p753, %s42, 1
        %s755 = scalar_lea.vmem %s1, %s754
        %p756 = pneg %p97
        %p757 = pneg %p94
        %p758 = scmp.lt.s32.totalorder %s42, 1
        %s759 = scalar_select %p758, %s42, 1
        %s760 = scalar_lea.vmem %s2, %s759
        %p761 = pneg %p123
        %p762 = pneg %p120
        %p763 = scmp.lt.s32.totalorder %s43, 1
        %s764 = scalar_select %p763, %s43, 1
        %s765 = smul.addr %s764, 8
        %s766 = smul.addr %s765, 4
        %s767 = scalar_lea.vmem %s3, %s766
        %p768 = pneg %p149
        %p769 = pneg %p146
        %p770 = scmp.lt.s32.totalorder %s43, 1
        %s771 = scalar_select %p770, %s43, 1
        %s772 = smul.addr %s771, 2
        %s773 = scalar_lea.vmem %s4, %s772
        %p774 = pneg %p175
        %p775 = pneg %p172
        %p776 = scmp.lt.s32.totalorder %s43, 1
        %s777 = scalar_select %p776, %s43, 1
        %s778 = smul.addr %s777, 8
        %s779 = smul.addr %s778, 4
        %s780 = scalar_lea.vmem %s5, %s779
        %p781 = pneg %p201
        %p782 = pneg %p198
        %p783 = scmp.lt.s32.totalorder %s43, 1
        %s784 = scalar_select %p783, %s43, 1
        %s785 = smul.addr %s784, 2
        %s786 = scalar_lea.vmem %s6, %s785
        %p787 = pneg %p227
        %p788 = pneg %p224
        %p789 = scmp.lt.s32.totalorder %s43, 1
        %s790 = scalar_select %p789, %s43, 1
        %s791 = smul.addr %s790, 8
        %s792 = smul.addr %s791, 4
        %s793 = scalar_lea.vmem %s7, %s792
        %p794 = pneg %p253
        %p795 = pneg %p250
        %p796 = scmp.lt.s32.totalorder %s43, 1
        %s797 = scalar_select %p796, %s43, 1
        %s798 = smul.addr %s797, 2
        %s799 = scalar_lea.vmem %s8, %s798
        %p800 = pneg %p279
        %p801 = pneg %p276
        %p802 = scmp.lt.s32.totalorder %s43, 1
        %s803 = scalar_select %p802, %s43, 1
        %s804 = smul.addr %s803, 4
        %s805 = smul.addr %s804, 4
        %s806 = scalar_lea.vmem %s9, %s805
        %p807 = pneg %p305
        %p808 = pneg %p302
        %p809 = scmp.lt.s32.totalorder %s43, 1
        %s810 = scalar_select %p809, %s43, 1
        %s811 = scalar_lea.vmem %s10, %s810
        %p812 = pneg %p331
        %p813 = pneg %p328
        %p814 = scmp.lt.s32.totalorder %s43, 1
        %s815 = scalar_select %p814, %s43, 1
        %s816 = scalar_lea.vmem %s11, %s815
        %p817 = pneg %p357
        %p818 = pneg %p354
        %p819 = scmp.lt.s32.totalorder %s43, 1
        %s820 = scalar_select %p819, %s43, 1
        %s821 = scalar_lea.vmem %s12, %s820
        %p822 = pneg %p383
        %p823 = pneg %p380
        %p824 = scmp.lt.s32.totalorder %s43, 1
        %s825 = scalar_select %p824, %s43, 1
        %s826 = smul.addr %s825, 4
        %s827 = smul.addr %s826, 4
        %s828 = scalar_lea.vmem %s13, %s827
        %p829 = pneg %p409
        %p830 = pneg %p406
        %p831 = scmp.lt.s32.totalorder %s43, 1
        %s832 = scalar_select %p831, %s43, 1
        %s833 = scalar_lea.vmem %s14, %s832
        %p834 = pneg %p435
        %p835 = pneg %p432
        %p836 = scmp.lt.s32.totalorder %s43, 1
        %s837 = scalar_select %p836, %s43, 1
        %s838 = smul.addr %s837, 8
        %s839 = smul.addr %s838, 4
        %s840 = scalar_lea.vmem %s15, %s839
        %p841 = pneg %p461
        %p842 = pneg %p458
        %p843 = scmp.lt.s32.totalorder %s43, 1
        %s844 = scalar_select %p843, %s43, 1
        %s845 = scalar_lea.vmem %s16, %s844
        %p846 = pneg %p487
        %p847 = pneg %p484
        %p848 = scmp.lt.s32.totalorder %s43, 1
        %s849 = scalar_select %p848, %s43, 1
        %s850 = scalar_lea.vmem %s17, %s849
        %p851 = pneg %p513
        %p852 = pneg %p510
        %p853 = scmp.lt.s32.totalorder %s43, 1
        %s854 = scalar_select %p853, %s43, 1
        %s855 = scalar_lea.vmem %s18, %s854
        %p856 = pneg %p539
        %p857 = pneg %p536
        %p858 = pneg %p565
        %p859 = pneg %p562
        %s860 = sand.u32 %s552, 1
        %s861 = scalar_lea.sflag [#allocation4], %s860
        %s862 = sand.u32 %s552, 1
        %s863 = smul.addr %s862, 8
        %s864 = scalar_lea.vmem [#allocation3], %s863
        %p865 = pneg %p591
        %p866 = pneg %p588
        %s867 = sand.u32 %s578, 1
        %s868 = scalar_lea.sflag [#allocation6], %s867
        %s869 = sand.u32 %s578, 1
        %s870 = smul.addr %s869, 8
        %s871 = scalar_lea.vmem [#allocation5], %s870
        %p872 = scmp.lt.s32.totalorder %s42, 1
        %s873 = scalar_select %p872, %s42, 1
        %s874 = smul.addr %s873, 8
        %s875 = scalar_lea.vmem %s0, %s874
        %p876 = scmp.lt.s32.totalorder %s42, 1
        %s877 = scalar_select %p876, %s42, 1
        %s878 = scalar_lea.vmem %s1, %s877
        %p879 = scmp.lt.s32.totalorder %s42, 1
        %s880 = scalar_select %p879, %s42, 1
        %s881 = scalar_lea.vmem %s2, %s880
        %p882 = scmp.lt.s32.totalorder %s43, 1
        %s883 = scalar_select %p882, %s43, 1
        %s884 = smul.addr %s883, 8
        %s885 = smul.addr %s884, 4
        %s886 = scalar_lea.vmem %s3, %s885
        %p887 = scmp.lt.s32.totalorder %s43, 1
        %s888 = scalar_select %p887, %s43, 1
        %s889 = smul.addr %s888, 2
        %s890 = scalar_lea.vmem %s4, %s889
        %p891 = scmp.lt.s32.totalorder %s43, 1
        %s892 = scalar_select %p891, %s43, 1
        %s893 = smul.addr %s892, 8
        %s894 = smul.addr %s893, 4
        %s895 = scalar_lea.vmem %s5, %s894
        %p896 = scmp.lt.s32.totalorder %s43, 1
        %s897 = scalar_select %p896, %s43, 1
        %s898 = smul.addr %s897, 2
        %s899 = scalar_lea.vmem %s6, %s898
        %p900 = scmp.lt.s32.totalorder %s43, 1
        %s901 = scalar_select %p900, %s43, 1
        %s902 = smul.addr %s901, 8
        %s903 = smul.addr %s902, 4
        %s904 = scalar_lea.vmem %s7, %s903
        %p905 = scmp.lt.s32.totalorder %s43, 1
        %s906 = scalar_select %p905, %s43, 1
        %s907 = smul.addr %s906, 2
        %s908 = scalar_lea.vmem %s8, %s907
        %p909 = scmp.lt.s32.totalorder %s43, 1
        %s910 = scalar_select %p909, %s43, 1
        %s911 = smul.addr %s910, 4
        %s912 = smul.addr %s911, 4
        %s913 = scalar_lea.vmem %s9, %s912
        %p914 = scmp.lt.s32.totalorder %s43, 1
        %s915 = scalar_select %p914, %s43, 1
        %s916 = scalar_lea.vmem %s10, %s915
        %p917 = scmp.lt.s32.totalorder %s43, 1
        %s918 = scalar_select %p917, %s43, 1
        %s919 = scalar_lea.vmem %s11, %s918
        %p920 = scmp.lt.s32.totalorder %s43, 1
        %s921 = scalar_select %p920, %s43, 1
        %s922 = scalar_lea.vmem %s12, %s921
        %p923 = scmp.lt.s32.totalorder %s43, 1
        %s924 = scalar_select %p923, %s43, 1
        %s925 = smul.addr %s924, 4
        %s926 = smul.addr %s925, 4
        %s927 = scalar_lea.vmem %s13, %s926
        %p928 = scmp.lt.s32.totalorder %s43, 1
        %s929 = scalar_select %p928, %s43, 1
        %s930 = scalar_lea.vmem %s14, %s929
        %p931 = scmp.lt.s32.totalorder %s43, 1
        %s932 = scalar_select %p931, %s43, 1
        %s933 = smul.addr %s932, 8
        %s934 = smul.addr %s933, 4
        %s935 = scalar_lea.vmem %s15, %s934
        %p936 = scmp.lt.s32.totalorder %s43, 1
        %s937 = scalar_select %p936, %s43, 1
        %s938 = scalar_lea.vmem %s16, %s937
        %p939 = scmp.lt.s32.totalorder %s43, 1
        %s940 = scalar_select %p939, %s43, 1
        %s941 = scalar_lea.vmem %s17, %s940
        %p942 = scmp.lt.s32.totalorder %s43, 1
        %s943 = scalar_select %p942, %s43, 1
        %s944 = scalar_lea.vmem %s18, %s943
        %p946 = scmp.eq.s32.totalorder %s43, 0
        // Predicated region
        $region97: #{tpu_custom_call.1} parent=95 // pred_check
          %p947 = pneg %p946
        $region98: #{tpu_custom_call.1} parent=95 // pred_check_branch
          %949 = sbr.rel (%p947) target = $region100
        $region99: #{tpu_custom_call.1} parent=95 // pred_region
          %v950 = vld [vmem:[%s875] sm:$0xff]
          %vm951 = vcmask 261120
          %952 = vst.msk [vmem:[#allocation2] sm:$0xff] %vm951, %v950
        $region100: #{tpu_custom_call.1} parent=95 // pred_fallthru
          _
        %v953 = vld [vmem:[#allocation2] sm:$0xff]
        %v954 = vld [vmem:[%s878] sm:$0x1]
        %v955 = vpack.c.bf16 %v953, %v953
        %v956 = vld [vmem:[%s886] sm:$0xf]
        %v957 = vld [vmem:[%s886 + $0x4] sm:$0xf]
        %v958 = vld [vmem:[%s886 + $0x8] sm:$0xf]
        %v959 = vld [vmem:[%s886 + $0xc] sm:$0xf]
        %v960 = vld [vmem:[%s886 + $0x10] sm:$0xf]
        %v961 = vld [vmem:[%s886 + $0x14] sm:$0xf]
        %v962 = vld [vmem:[%s886 + $0x18] sm:$0xf]
        %v963 = vld [vmem:[%s886 + $0x1c] sm:$0xf]
        %v964 = vld [vmem:[%s890] sm:$0x1]
        %v965 = vld [vmem:[%s890 + $0x1] sm:$0x1]
        %v968 = vlaneseq
        %v969 = vshrl.u32 %v968, 7
        %v970 = vsub.s32 0, %v969
        %v971 = vrot.slane %v964, %v970
        %v972 = vlaneseq
        %v973 = vshrl.u32 %v972, 7
        %v974 = vsub.s32 0, %v973
        %v975 = vrot.slane %v965, %v974
        %v982 = vunpack.c.l.b16 %v956
        %v983 = vunpack.c.l.b16 %v957
        %v984 = vunpack.c.l.b16 %v958
        %v985 = vunpack.c.l.b16 %v959
        %v986 = vpack.c.b16 %v983, %v982
        %v987 = vpack.c.b16 %v985, %v984
        %vm990 = vcmask 261120
        %v992 = vsel %vm990, %v955, 0
        %994 = vmatprep.subr.bf16.mxu0 0
        %995 = vmatpush1.bf16.msra.mxu0 %v986
        %996 = vmatprep.subr.bf16.mxu0 0
        %997 = vmatpush1.bf16.msra.mxu0 %v987
        %998 = vmatprep.subr.bf16.mxu0 0
        %999 = vmatpush1.bf16.msra.mxu0 0
        %1000 = vmatprep.subr.bf16.mxu0 0
        %1001 = vmatpush1.bf16.msra.mxu0 0
        %1002 = vmatprep.subr.bf16.mxu0 0
        %1003 = vmatpush1.bf16.msra.mxu0 0
        %1004 = vmatprep.subr.bf16.mxu0 0
        %1005 = vmatpush1.bf16.msra.mxu0 0
        %1006 = vmatprep.subr.bf16.mxu0 0
        %1007 = vmatpush1.bf16.msra.mxu0 0
        %1008 = vmatprep.subr.bf16.mxu0 0
        %1009 = vmatpush1.bf16.msra.mxu0 0
        %1010 = vmatprep.subr.bf16.mxu0 0
        %1011 = vmatpush1.bf16.msra.mxu0 0
        %1012 = vmatprep.subr.bf16.mxu0 0
        %1013 = vmatpush1.bf16.msra.mxu0 0
        %1014 = vmatprep.subr.bf16.mxu0 0
        %1015 = vmatpush1.bf16.msra.mxu0 0
        %1016 = vmatprep.subr.bf16.mxu0 0
        %1017 = vmatpush1.bf16.msra.mxu0 0
        %1018 = vmatprep.subr.bf16.mxu0 0
        %1019 = vmatpush1.bf16.msra.mxu0 0
        %1020 = vmatprep.subr.bf16.mxu0 0
        %1021 = vmatpush1.bf16.msra.mxu0 0
        %1022 = vmatprep.subr.bf16.mxu0 0
        %1023 = vmatpush1.bf16.msra.mxu0 0
        %1024 = vmatprep.subr.bf16.mxu0 0
        %1025 = vmatpush1.bf16.msra.mxu0 0
        %1026 = vmatprep.mubr.bf16.mxu0 0
        %1027 = vmatmul.mubr.bf16.gmra.mrb[0].mxu0 %v992
        %v1028 = vpop.f32.mrb[0].mxu0
        %v1029 = vadd.f32 %v971, %v1028
        %v1030 = vpop.f32.mrb[0].mxu0
        %v1031 = vpop.f32.mrb[0].mxu0
        %v1032 = vpop.f32.mrb[0].mxu0
        %1033 = vdwg.mxu0
        %v1038 = vunpack.c.l.b16 %v960
        %v1039 = vunpack.c.l.b16 %v961
        %v1040 = vunpack.c.l.b16 %v962
        %v1041 = vunpack.c.l.b16 %v963
        %v1042 = vpack.c.b16 %v1039, %v1038
        %v1043 = vpack.c.b16 %v1041, %v1040
        %1046 = vmatprep.subr.bf16.mxu0 0
        %1047 = vmatpush1.bf16.msra.mxu0 %v1042
        %1048 = vmatprep.subr.bf16.mxu0 0
        %1049 = vmatpush1.bf16.msra.mxu0 %v1043
        %1050 = vmatprep.subr.bf16.mxu0 0
        %1051 = vmatpush1.bf16.msra.mxu0 0
        %1052 = vmatprep.subr.bf16.mxu0 0
        %1053 = vmatpush1.bf16.msra.mxu0 0
        %1054 = vmatprep.subr.bf16.mxu0 0
        %1055 = vmatpush1.bf16.msra.mxu0 0
        %1056 = vmatprep.subr.bf16.mxu0 0
        %1057 = vmatpush1.bf16.msra.mxu0 0
        %1058 = vmatprep.subr.bf16.mxu0 0
        %1059 = vmatpush1.bf16.msra.mxu0 0
        %1060 = vmatprep.subr.bf16.mxu0 0
        %1061 = vmatpush1.bf16.msra.mxu0 0
        %1062 = vmatprep.subr.bf16.mxu0 0
        %1063 = vmatpush1.bf16.msra.mxu0 0
        %1064 = vmatprep.subr.bf16.mxu0 0
        %1065 = vmatpush1.bf16.msra.mxu0 0
        %1066 = vmatprep.subr.bf16.mxu0 0
        %1067 = vmatpush1.bf16.msra.mxu0 0
        %1068 = vmatprep.subr.bf16.mxu0 0
        %1069 = vmatpush1.bf16.msra.mxu0 0
        %1070 = vmatprep.subr.bf16.mxu0 0
        %1071 = vmatpush1.bf16.msra.mxu0 0
        %1072 = vmatprep.subr.bf16.mxu0 0
        %1073 = vmatpush1.bf16.msra.mxu0 0
        %1074 = vmatprep.subr.bf16.mxu0 0
        %1075 = vmatpush1.bf16.msra.mxu0 0
        %1076 = vmatprep.subr.bf16.mxu0 0
        %1077 = vmatpush1.bf16.msra.mxu0 0
        %1078 = vmatprep.mubr.bf16.mxu0 0
        %1079 = vmatmul.mubr.bf16.gmra.mrb[0].mxu0 %v992
        %v1080 = vpop.f32.mrb[0].mxu0
        %v1081 = vadd.f32 %v975, %v1080
        %v1082 = vpop.f32.mrb[0].mxu0
        %v1083 = vpop.f32.mrb[0].mxu0
        %v1084 = vpop.f32.mrb[0].mxu0
        %1085 = vdwg.mxu0
        %v1086 = vld [vmem:[%s895] sm:$0xf]
        %v1087 = vld [vmem:[%s895 + $0x4] sm:$0xf]
        %v1088 = vld [vmem:[%s895 + $0x8] sm:$0xf]
        %v1089 = vld [vmem:[%s895 + $0xc] sm:$0xf]
        %v1090 = vld [vmem:[%s895 + $0x10] sm:$0xf]
        %v1091 = vld [vmem:[%s895 + $0x14] sm:$0xf]
        %v1092 = vld [vmem:[%s895 + $0x18] sm:$0xf]
        %v1093 = vld [vmem:[%s895 + $0x1c] sm:$0xf]
        %v1094 = vld [vmem:[%s899] sm:$0x1]
        %v1095 = vld [vmem:[%s899 + $0x1] sm:$0x1]
        %v1098 = vlaneseq
        %v1099 = vshrl.u32 %v1098, 7
        %v1100 = vsub.s32 0, %v1099
        %v1101 = vrot.slane %v1094, %v1100
        %v1102 = vlaneseq
        %v1103 = vshrl.u32 %v1102, 7
        %v1104 = vsub.s32 0, %v1103
        %v1105 = vrot.slane %v1095, %v1104
        %v1112 = vunpack.c.l.b16 %v1086
        %v1113 = vunpack.c.l.b16 %v1087
        %v1114 = vunpack.c.l.b16 %v1088
        %v1115 = vunpack.c.l.b16 %v1089
        %v1116 = vpack.c.b16 %v1113, %v1112
        %v1117 = vpack.c.b16 %v1115, %v1114
        %1120 = vmatprep.subr.bf16.mxu0 0
        %1121 = vmatpush1.bf16.msra.mxu0 %v1116
        %1122 = vmatprep.subr.bf16.mxu0 0
        %1123 = vmatpush1.bf16.msra.mxu0 %v1117
        %1124 = vmatprep.subr.bf16.mxu0 0
        %1125 = vmatpush1.bf16.msra.mxu0 0
        %1126 = vmatprep.subr.bf16.mxu0 0
        %1127 = vmatpush1.bf16.msra.mxu0 0
        %1128 = vmatprep.subr.bf16.mxu0 0
        %1129 = vmatpush1.bf16.msra.mxu0 0
        %1130 = vmatprep.subr.bf16.mxu0 0
        %1131 = vmatpush1.bf16.msra.mxu0 0
        %1132 = vmatprep.subr.bf16.mxu0 0
        %1133 = vmatpush1.bf16.msra.mxu0 0
        %1134 = vmatprep.subr.bf16.mxu0 0
        %1135 = vmatpush1.bf16.msra.mxu0 0
        %1136 = vmatprep.subr.bf16.mxu0 0
        %1137 = vmatpush1.bf16.msra.mxu0 0
        %1138 = vmatprep.subr.bf16.mxu0 0
        %1139 = vmatpush1.bf16.msra.mxu0 0
        %1140 = vmatprep.subr.bf16.mxu0 0
        %1141 = vmatpush1.bf16.msra.mxu0 0
        %1142 = vmatprep.subr.bf16.mxu0 0
        %1143 = vmatpush1.bf16.msra.mxu0 0
        %1144 = vmatprep.subr.bf16.mxu0 0
        %1145 = vmatpush1.bf16.msra.mxu0 0
        %1146 = vmatprep.subr.bf16.mxu0 0
        %1147 = vmatpush1.bf16.msra.mxu0 0
        %1148 = vmatprep.subr.bf16.mxu0 0
        %1149 = vmatpush1.bf16.msra.mxu0 0
        %1150 = vmatprep.subr.bf16.mxu0 0
        %1151 = vmatpush1.bf16.msra.mxu0 0
        %1152 = vmatprep.mubr.bf16.mxu0 0
        %1153 = vmatmul.mubr.bf16.gmra.mrb[0].mxu0 %v992
        %v1154 = vpop.f32.mrb[0].mxu0
        %v1155 = vadd.f32 %v1101, %v1154
        %v1156 = vpop.f32.mrb[0].mxu0
        %v1157 = vpop.f32.mrb[0].mxu0
        %v1158 = vpop.f32.mrb[0].mxu0
        %1159 = vdwg.mxu0
        %v1164 = vunpack.c.l.b16 %v1090
        %v1165 = vunpack.c.l.b16 %v1091
        %v1166 = vunpack.c.l.b16 %v1092
        %v1167 = vunpack.c.l.b16 %v1093
        %v1168 = vpack.c.b16 %v1165, %v1164
        %v1169 = vpack.c.b16 %v1167, %v1166
        %1172 = vmatprep.subr.bf16.mxu0 0
        %1173 = vmatpush1.bf16.msra.mxu0 %v1168
        %1174 = vmatprep.subr.bf16.mxu0 0
        %1175 = vmatpush1.bf16.msra.mxu0 %v1169
        %1176 = vmatprep.subr.bf16.mxu0 0
        %1177 = vmatpush1.bf16.msra.mxu0 0
        %1178 = vmatprep.subr.bf16.mxu0 0
        %1179 = vmatpush1.bf16.msra.mxu0 0
        %1180 = vmatprep.subr.bf16.mxu0 0
        %1181 = vmatpush1.bf16.msra.mxu0 0
        %1182 = vmatprep.subr.bf16.mxu0 0
        %1183 = vmatpush1.bf16.msra.mxu0 0
        %1184 = vmatprep.subr.bf16.mxu0 0
        %1185 = vmatpush1.bf16.msra.mxu0 0
        %1186 = vmatprep.subr.bf16.mxu0 0
        %1187 = vmatpush1.bf16.msra.mxu0 0
        %1188 = vmatprep.subr.bf16.mxu0 0
        %1189 = vmatpush1.bf16.msra.mxu0 0
        %1190 = vmatprep.subr.bf16.mxu0 0
        %1191 = vmatpush1.bf16.msra.mxu0 0
        %1192 = vmatprep.subr.bf16.mxu0 0
        %1193 = vmatpush1.bf16.msra.mxu0 0
        %1194 = vmatprep.subr.bf16.mxu0 0
        %1195 = vmatpush1.bf16.msra.mxu0 0
        %1196 = vmatprep.subr.bf16.mxu0 0
        %1197 = vmatpush1.bf16.msra.mxu0 0
        %1198 = vmatprep.subr.bf16.mxu0 0
        %1199 = vmatpush1.bf16.msra.mxu0 0
        %1200 = vmatprep.subr.bf16.mxu0 0
        %1201 = vmatpush1.bf16.msra.mxu0 0
        %1202 = vmatprep.subr.bf16.mxu0 0
        %1203 = vmatpush1.bf16.msra.mxu0 0
        %1204 = vmatprep.mubr.bf16.mxu0 0
        %1205 = vmatmul.mubr.bf16.gmra.mrb[0].mxu0 %v992
        %v1206 = vpop.f32.mrb[0].mxu0
        %v1207 = vadd.f32 %v1105, %v1206
        %v1208 = vpop.f32.mrb[0].mxu0
        %v1209 = vpop.f32.mrb[0].mxu0
        %v1210 = vpop.f32.mrb[0].mxu0
        %1211 = vdwg.mxu0
        %v1212 = vld [vmem:[%s904] sm:$0xf]
        %v1213 = vld [vmem:[%s904 + $0x4] sm:$0xf]
        %v1214 = vld [vmem:[%s904 + $0x8] sm:$0xf]
        %v1215 = vld [vmem:[%s904 + $0xc] sm:$0xf]
        %v1216 = vld [vmem:[%s904 + $0x10] sm:$0xf]
        %v1217 = vld [vmem:[%s904 + $0x14] sm:$0xf]
        %v1218 = vld [vmem:[%s904 + $0x18] sm:$0xf]
        %v1219 = vld [vmem:[%s904 + $0x1c] sm:$0xf]
        %v1220 = vld [vmem:[%s908] sm:$0x1]
        %v1221 = vld [vmem:[%s908 + $0x1] sm:$0x1]
        %v1224 = vlaneseq
        %v1225 = vshrl.u32 %v1224, 7
        %v1226 = vsub.s32 0, %v1225
        %v1227 = vrot.slane %v1220, %v1226
        %v1228 = vlaneseq
        %v1229 = vshrl.u32 %v1228, 7
        %v1230 = vsub.s32 0, %v1229
        %v1231 = vrot.slane %v1221, %v1230
        %v1238 = vunpack.c.l.b16 %v1212
        %v1239 = vunpack.c.l.b16 %v1213
        %v1240 = vunpack.c.l.b16 %v1214
        %v1241 = vunpack.c.l.b16 %v1215
        %v1242 = vpack.c.b16 %v1239, %v1238
        %v1243 = vpack.c.b16 %v1241, %v1240
        %1246 = vmatprep.subr.bf16.mxu0 0
        %1247 = vmatpush1.bf16.msra.mxu0 %v1242
        %1248 = vmatprep.subr.bf16.mxu0 0
        %1249 = vmatpush1.bf16.msra.mxu0 %v1243
        %1250 = vmatprep.subr.bf16.mxu0 0
        %1251 = vmatpush1.bf16.msra.mxu0 0
        %1252 = vmatprep.subr.bf16.mxu0 0
        %1253 = vmatpush1.bf16.msra.mxu0 0
        %1254 = vmatprep.subr.bf16.mxu0 0
        %1255 = vmatpush1.bf16.msra.mxu0 0
        %1256 = vmatprep.subr.bf16.mxu0 0
        %1257 = vmatpush1.bf16.msra.mxu0 0
        %1258 = vmatprep.subr.bf16.mxu0 0
        %1259 = vmatpush1.bf16.msra.mxu0 0
        %1260 = vmatprep.subr.bf16.mxu0 0
        %1261 = vmatpush1.bf16.msra.mxu0 0
        %1262 = vmatprep.subr.bf16.mxu0 0
        %1263 = vmatpush1.bf16.msra.mxu0 0
        %1264 = vmatprep.subr.bf16.mxu0 0
        %1265 = vmatpush1.bf16.msra.mxu0 0
        %1266 = vmatprep.subr.bf16.mxu0 0
        %1267 = vmatpush1.bf16.msra.mxu0 0
        %1268 = vmatprep.subr.bf16.mxu0 0
        %1269 = vmatpush1.bf16.msra.mxu0 0
        %1270 = vmatprep.subr.bf16.mxu0 0
        %1271 = vmatpush1.bf16.msra.mxu0 0
        %1272 = vmatprep.subr.bf16.mxu0 0
        %1273 = vmatpush1.bf16.msra.mxu0 0
        %1274 = vmatprep.subr.bf16.mxu0 0
        %1275 = vmatpush1.bf16.msra.mxu0 0
        %1276 = vmatprep.subr.bf16.mxu0 0
        %1277 = vmatpush1.bf16.msra.mxu0 0
        %1278 = vmatprep.mubr.bf16.mxu0 0
        %1279 = vmatmul.mubr.bf16.gmra.mrb[0].mxu0 %v992
        %v1280 = vpop.f32.mrb[0].mxu0
        %v1281 = vadd.f32 %v1227, %v1280
        %v1282 = vpop.f32.mrb[0].mxu0
        %v1283 = vpop.f32.mrb[0].mxu0
        %v1284 = vpop.f32.mrb[0].mxu0
        %1285 = vdwg.mxu0
        %v1290 = vunpack.c.l.b16 %v1216
        %v1291 = vunpack.c.l.b16 %v1217
        %v1292 = vunpack.c.l.b16 %v1218
        %v1293 = vunpack.c.l.b16 %v1219
        %v1294 = vpack.c.b16 %v1291, %v1290
        %v1295 = vpack.c.b16 %v1293, %v1292
        %1298 = vmatprep.subr.bf16.mxu0 0
        %1299 = vmatpush1.bf16.msra.mxu0 %v1294
        %1300 = vmatprep.subr.bf16.mxu0 0
        %1301 = vmatpush1.bf16.msra.mxu0 %v1295
        %1302 = vmatprep.subr.bf16.mxu0 0
        %1303 = vmatpush1.bf16.msra.mxu0 0
        %1304 = vmatprep.subr.bf16.mxu0 0
        %1305 = vmatpush1.bf16.msra.mxu0 0
        %1306 = vmatprep.subr.bf16.mxu0 0
        %1307 = vmatpush1.bf16.msra.mxu0 0
        %1308 = vmatprep.subr.bf16.mxu0 0
        %1309 = vmatpush1.bf16.msra.mxu0 0
        %1310 = vmatprep.subr.bf16.mxu0 0
        %1311 = vmatpush1.bf16.msra.mxu0 0
        %1312 = vmatprep.subr.bf16.mxu0 0
        %1313 = vmatpush1.bf16.msra.mxu0 0
        %1314 = vmatprep.subr.bf16.mxu0 0
        %1315 = vmatpush1.bf16.msra.mxu0 0
        %1316 = vmatprep.subr.bf16.mxu0 0
        %1317 = vmatpush1.bf16.msra.mxu0 0
        %1318 = vmatprep.subr.bf16.mxu0 0
        %1319 = vmatpush1.bf16.msra.mxu0 0
        %1320 = vmatprep.subr.bf16.mxu0 0
        %1321 = vmatpush1.bf16.msra.mxu0 0
        %1322 = vmatprep.subr.bf16.mxu0 0
        %1323 = vmatpush1.bf16.msra.mxu0 0
        %1324 = vmatprep.subr.bf16.mxu0 0
        %1325 = vmatpush1.bf16.msra.mxu0 0
        %1326 = vmatprep.subr.bf16.mxu0 0
        %1327 = vmatpush1.bf16.msra.mxu0 0
        %1328 = vmatprep.subr.bf16.mxu0 0
        %1329 = vmatpush1.bf16.msra.mxu0 0
        %1330 = vmatprep.mubr.bf16.mxu0 0
        %1331 = vmatmul.mubr.bf16.gmra.mrb[0].mxu0 %v992
        %v1332 = vpop.f32.mrb[0].mxu0
        %v1333 = vadd.f32 %v1231, %v1332
        %v1334 = vpop.f32.mrb[0].mxu0
        %v1335 = vpop.f32.mrb[0].mxu0
        %v1336 = vpop.f32.mrb[0].mxu0
        %1337 = vdwg.mxu0
        %v1338 = vpack.c.bf16 %v1029, %v1029
        %v1339 = vpack.c.bf16 %v1081, %v1081
        %v1340 = vpack.c.bf16 %v1155, %v1155
        %v1341 = vpack.c.bf16 %v1207, %v1207
        %vm1342 = vcmask 130048
        %v1344 = vsel %vm1342, %v1338, 0
        %v1347 = vsel %vm1342, %v1340, 0
        %1349 = vmatprep.subr.bf16.mxu0 0
        %1350 = vmatpush1.bf16.xpose.msra.mxu0 %v1347
        %1351 = vmatprep.subr.bf16.mxu0 0
        %1352 = vmatpush1.bf16.xpose.msra.mxu0 0
        %1353 = vmatprep.subr.bf16.mxu0 0
        %1354 = vmatpush1.bf16.xpose.msra.mxu0 0
        %1355 = vmatprep.subr.bf16.mxu0 0
        %1356 = vmatpush1.bf16.xpose.msra.mxu0 0
        %1357 = vmatprep.subr.bf16.mxu0 0
        %1358 = vmatpush1.bf16.xpose.msra.mxu0 0
        %1359 = vmatprep.subr.bf16.mxu0 0
        %1360 = vmatpush1.bf16.xpose.msra.mxu0 0
        %1361 = vmatprep.subr.bf16.mxu0 0
        %1362 = vmatpush1.bf16.xpose.msra.mxu0 0
        %1363 = vmatprep.subr.bf16.mxu0 0
        %1364 = vmatpush1.bf16.xpose.msra.mxu0 0
        %1365 = vmatprep.subr.bf16.mxu0 0
        %1366 = vmatpush1.bf16.xpose.msra.mxu0 0
        %1367 = vmatprep.subr.bf16.mxu0 0
        %1368 = vmatpush1.bf16.xpose.msra.mxu0 0
        %1369 = vmatprep.subr.bf16.mxu0 0
        %1370 = vmatpush1.bf16.xpose.msra.mxu0 0
        %1371 = vmatprep.subr.bf16.mxu0 0
        %1372 = vmatpush1.bf16.xpose.msra.mxu0 0
        %1373 = vmatprep.subr.bf16.mxu0 0
        %1374 = vmatpush1.bf16.xpose.msra.mxu0 0
        %1375 = vmatprep.subr.bf16.mxu0 0
        %1376 = vmatpush1.bf16.xpose.msra.mxu0 0
        %1377 = vmatprep.subr.bf16.mxu0 0
        %1378 = vmatpush1.bf16.xpose.msra.mxu0 0
        %1379 = vmatprep.subr.bf16.mxu0 0
        %1380 = vmatpush1.bf16.xpose.msra.mxu0 0
        %1381 = vmatprep.mubr.bf16.mxu0 0
        %1382 = vmatmul.mubr.bf16.gmra.mrb[0].mxu0 %v1344
        %v1383 = vpop.f32.mrb[0].mxu0
        %v1384 = vadd.f32 0.0, %v1383
        %v1385 = vpop.f32.mrb[0].mxu0
        %v1386 = vpop.f32.mrb[0].mxu0
        %v1387 = vpop.f32.mrb[0].mxu0
        %1388 = vdwg.mxu0
        %v1390 = vsel %vm1342, %v1339, 0
        %v1393 = vsel %vm1342, %v1341, 0
        %1395 = vmatprep.subr.bf16.mxu0 0
        %1396 = vmatpush1.bf16.xpose.msra.mxu0 %v1393
        %1397 = vmatprep.subr.bf16.mxu0 0
        %1398 = vmatpush1.bf16.xpose.msra.mxu0 0
        %1399 = vmatprep.subr.bf16.mxu0 0
        %1400 = vmatpush1.bf16.xpose.msra.mxu0 0
        %1401 = vmatprep.subr.bf16.mxu0 0
        %1402 = vmatpush1.bf16.xpose.msra.mxu0 0
        %1403 = vmatprep.subr.bf16.mxu0 0
        %1404 = vmatpush1.bf16.xpose.msra.mxu0 0
        %1405 = vmatprep.subr.bf16.mxu0 0
        %1406 = vmatpush1.bf16.xpose.msra.mxu0 0
        %1407 = vmatprep.subr.bf16.mxu0 0
        %1408 = vmatpush1.bf16.xpose.msra.mxu0 0
        %1409 = vmatprep.subr.bf16.mxu0 0
        %1410 = vmatpush1.bf16.xpose.msra.mxu0 0
        %1411 = vmatprep.subr.bf16.mxu0 0
        %1412 = vmatpush1.bf16.xpose.msra.mxu0 0
        %1413 = vmatprep.subr.bf16.mxu0 0
        %1414 = vmatpush1.bf16.xpose.msra.mxu0 0
        %1415 = vmatprep.subr.bf16.mxu0 0
        %1416 = vmatpush1.bf16.xpose.msra.mxu0 0
        %1417 = vmatprep.subr.bf16.mxu0 0
        %1418 = vmatpush1.bf16.xpose.msra.mxu0 0
        %1419 = vmatprep.subr.bf16.mxu0 0
        %1420 = vmatpush1.bf16.xpose.msra.mxu0 0
        %1421 = vmatprep.subr.bf16.mxu0 0
        %1422 = vmatpush1.bf16.xpose.msra.mxu0 0
        %1423 = vmatprep.subr.bf16.mxu0 0
        %1424 = vmatpush1.bf16.xpose.msra.mxu0 0
        %1425 = vmatprep.subr.bf16.mxu0 0
        %1426 = vmatpush1.bf16.xpose.msra.mxu0 0
        %1427 = vmatprep.mubr.bf16.mxu0 0
        %1428 = vmatmul.mubr.bf16.gmra.mrb[0].mxu0 %v1390
        %v1429 = vpop.f32.mrb[0].mxu0
        %v1430 = vadd.f32 0.0, %v1429
        %v1431 = vpop.f32.mrb[0].mxu0
        %v1432 = vpop.f32.mrb[0].mxu0
        %v1433 = vpop.f32.mrb[0].mxu0
        %1434 = vdwg.mxu0
        %v1435 = vmul.f32 %v1384, 0.25
        %v1436 = vmul.f32 %v1430, 0.25
        %v1438 = vlaneseq
        %v1439 = vshrl.u32 %v1438, 7
        %v1440 = vsub.s32 0, %v1439
        %v1441 = vrot.slane %v954, %v1440
        %v1443 = vadd.f32 %v1435, %v1441
        %v1444 = vadd.f32 %v1436, %v1441
        %vm1445 = vcmask 64512
        %v1446 = vsel %vm1445, %v1443, -inf
        %1447 = vmax.xlane.f32.xlu0 %v1446
        %v1448 = vpop.xlane.xlu0 %1447
        %v1449 = vsel %vm1445, %v1444, -inf
        %1450 = vmax.xlane.f32.xlu0 %v1449
        %v1451 = vpop.xlane.xlu0 %1450
        %v1452 = vsub.f32 %v1443, %v1448
        %v1453 = vsub.f32 %v1444, %v1451
        %v1454 = vmul.f32 %v1452, 1.442695
        %v1455 = vpow.pop %v1454
        %v1456 = vmul.f32 %v1453, 1.442695
        %v1457 = vpow.pop %v1456
        %v1458 = vsel %vm1445, %v1455, 0.0
        %1459 = vadd.xlane.f32.xlu0 %v1458
        %v1460 = vpop.xlane.xlu0 %1459
        %v1461 = vsel %vm1445, %v1457, 0.0
        %1462 = vadd.xlane.f32.xlu0 %v1461
        %v1463 = vpop.xlane.xlu0 %1462
        %v1464 = vrcp.pop %v1460
        %v1465 = vrcp.pop %v1463
        %v1466 = vmul.f32 %v1455, %v1464
        %v1467 = vmul.f32 %v1457, %v1465
        %v1468 = vpack.c.bf16 %v1466, %v1466
        %v1469 = vpack.c.bf16 %v1467, %v1467
        %v1470 = vpack.c.bf16 %v1281, %v1281
        %v1471 = vpack.c.bf16 %v1333, %v1333
        %v1473 = vsel %vm1445, %v1468, 0
        %vm1475 = vcmask 1043456
        %v1477 = vsel %vm1475, %v1470, 0
        %1479 = vmatprep.subr.bf16.mxu0 0
        %1480 = vmatpush1.bf16.msra.mxu0 %v1477
        %1481 = vmatprep.subr.bf16.mxu0 0
        %1482 = vmatpush1.bf16.msra.mxu0 0
        %1483 = vmatprep.subr.bf16.mxu0 0
        %1484 = vmatpush1.bf16.msra.mxu0 0
        %1485 = vmatprep.subr.bf16.mxu0 0
        %1486 = vmatpush1.bf16.msra.mxu0 0
        %1487 = vmatprep.subr.bf16.mxu0 0
        %1488 = vmatpush1.bf16.msra.mxu0 0
        %1489 = vmatprep.subr.bf16.mxu0 0
        %1490 = vmatpush1.bf16.msra.mxu0 0
        %1491 = vmatprep.subr.bf16.mxu0 0
        %1492 = vmatpush1.bf16.msra.mxu0 0
        %1493 = vmatprep.subr.bf16.mxu0 0
        %1494 = vmatpush1.bf16.msra.mxu0 0
        %1495 = vmatprep.subr.bf16.mxu0 0
        %1496 = vmatpush1.bf16.msra.mxu0 0
        %1497 = vmatprep.subr.bf16.mxu0 0
        %1498 = vmatpush1.bf16.msra.mxu0 0
        %1499 = vmatprep.subr.bf16.mxu0 0
        %1500 = vmatpush1.bf16.msra.mxu0 0
        %1501 = vmatprep.subr.bf16.mxu0 0
        %1502 = vmatpush1.bf16.msra.mxu0 0
        %1503 = vmatprep.subr.bf16.mxu0 0
        %1504 = vmatpush1.bf16.msra.mxu0 0
        %1505 = vmatprep.subr.bf16.mxu0 0
        %1506 = vmatpush1.bf16.msra.mxu0 0
        %1507 = vmatprep.subr.bf16.mxu0 0
        %1508 = vmatpush1.bf16.msra.mxu0 0
        %1509 = vmatprep.subr.bf16.mxu0 0
        %1510 = vmatpush1.bf16.msra.mxu0 0
        %1511 = vmatprep.mubr.bf16.mxu0 0
        %1512 = vmatmul.mubr.bf16.gmra.mrb[0].mxu0 %v1473
        %v1513 = vpop.f32.mrb[0].mxu0
        %v1514 = vadd.f32 0.0, %v1513
        %v1515 = vpop.f32.mrb[0].mxu0
        %v1516 = vpop.f32.mrb[0].mxu0
        %v1517 = vpop.f32.mrb[0].mxu0
        %1518 = vdwg.mxu0
        %v1520 = vsel %vm1445, %v1469, 0
        %v1523 = vsel %vm1475, %v1471, 0
        %1525 = vmatprep.subr.bf16.mxu0 0
        %1526 = vmatpush1.bf16.msra.mxu0 %v1523
        %1527 = vmatprep.subr.bf16.mxu0 0
        %1528 = vmatpush1.bf16.msra.mxu0 0
        %1529 = vmatprep.subr.bf16.mxu0 0
        %1530 = vmatpush1.bf16.msra.mxu0 0
        %1531 = vmatprep.subr.bf16.mxu0 0
        %1532 = vmatpush1.bf16.msra.mxu0 0
        %1533 = vmatprep.subr.bf16.mxu0 0
        %1534 = vmatpush1.bf16.msra.mxu0 0
        %1535 = vmatprep.subr.bf16.mxu0 0
        %1536 = vmatpush1.bf16.msra.mxu0 0
        %1537 = vmatprep.subr.bf16.mxu0 0
        %1538 = vmatpush1.bf16.msra.mxu0 0
        %1539 = vmatprep.subr.bf16.mxu0 0
        %1540 = vmatpush1.bf16.msra.mxu0 0
        %1541 = vmatprep.subr.bf16.mxu0 0
        %1542 = vmatpush1.bf16.msra.mxu0 0
        %1543 = vmatprep.subr.bf16.mxu0 0
        %1544 = vmatpush1.bf16.msra.mxu0 0
        %1545 = vmatprep.subr.bf16.mxu0 0
        %1546 = vmatpush1.bf16.msra.mxu0 0
        %1547 = vmatprep.subr.bf16.mxu0 0
        %1548 = vmatpush1.bf16.msra.mxu0 0
        %1549 = vmatprep.subr.bf16.mxu0 0
        %1550 = vmatpush1.bf16.msra.mxu0 0
        %1551 = vmatprep.subr.bf16.mxu0 0
        %1552 = vmatpush1.bf16.msra.mxu0 0
        %1553 = vmatprep.subr.bf16.mxu0 0
        %1554 = vmatpush1.bf16.msra.mxu0 0
        %1555 = vmatprep.subr.bf16.mxu0 0
        %1556 = vmatpush1.bf16.msra.mxu0 0
        %1557 = vmatprep.mubr.bf16.mxu0 0
        %1558 = vmatmul.mubr.bf16.gmra.mrb[0].mxu0 %v1520
        %v1559 = vpop.f32.mrb[0].mxu0
        %v1560 = vadd.f32 0.0, %v1559
        %v1561 = vpop.f32.mrb[0].mxu0
        %v1562 = vpop.f32.mrb[0].mxu0
        %v1563 = vpop.f32.mrb[0].mxu0
        %1564 = vdwg.mxu0
        %v1565 = vpack.c.bf16 %v1514, %v1514
        %v1566 = vpack.c.bf16 %v1560, %v1560
        %v1567 = vld [vmem:[%s913] sm:$0xf]
        %v1568 = vld [vmem:[%s913 + $0x4] sm:$0xf]
        %v1569 = vld [vmem:[%s913 + $0x8] sm:$0xf]
        %v1570 = vld [vmem:[%s913 + $0xc] sm:$0xf]
        %v1573 = vunpack.c.l.b16 %v1567
        %v1574 = vunpack.c.l.b16 %v1568
        %v1575 = vpack.c.b16 %v1574, %v1573
        %v1578 = vsel %vm1342, %v1565, 0
        %1580 = vmatprep.subr.bf16.mxu0 0
        %1581 = vmatpush1.bf16.msra.mxu0 %v1575
        %1582 = vmatprep.subr.bf16.mxu0 0
        %1583 = vmatpush1.bf16.msra.mxu0 0
        %1584 = vmatprep.subr.bf16.mxu0 0
        %1585 = vmatpush1.bf16.msra.mxu0 0
        %1586 = vmatprep.subr.bf16.mxu0 0
        %1587 = vmatpush1.bf16.msra.mxu0 0
        %1588 = vmatprep.subr.bf16.mxu0 0
        %1589 = vmatpush1.bf16.msra.mxu0 0
        %1590 = vmatprep.subr.bf16.mxu0 0
        %1591 = vmatpush1.bf16.msra.mxu0 0
        %1592 = vmatprep.subr.bf16.mxu0 0
        %1593 = vmatpush1.bf16.msra.mxu0 0
        %1594 = vmatprep.subr.bf16.mxu0 0
        %1595 = vmatpush1.bf16.msra.mxu0 0
        %1596 = vmatprep.subr.bf16.mxu0 0
        %1597 = vmatpush1.bf16.msra.mxu0 0
        %1598 = vmatprep.subr.bf16.mxu0 0
        %1599 = vmatpush1.bf16.msra.mxu0 0
        %1600 = vmatprep.subr.bf16.mxu0 0
        %1601 = vmatpush1.bf16.msra.mxu0 0
        %1602 = vmatprep.subr.bf16.mxu0 0
        %1603 = vmatpush1.bf16.msra.mxu0 0
        %1604 = vmatprep.subr.bf16.mxu0 0
        %1605 = vmatpush1.bf16.msra.mxu0 0
        %1606 = vmatprep.subr.bf16.mxu0 0
        %1607 = vmatpush1.bf16.msra.mxu0 0
        %1608 = vmatprep.subr.bf16.mxu0 0
        %1609 = vmatpush1.bf16.msra.mxu0 0
        %1610 = vmatprep.subr.bf16.mxu0 0
        %1611 = vmatpush1.bf16.msra.mxu0 0
        %1612 = vmatprep.mubr.bf16.mxu0 0
        %1613 = vmatmul.mubr.bf16.gmra.mrb[0].mxu0 %v1578
        %v1614 = vpop.f32.mrb[0].mxu0
        %v1615 = vadd.f32 0.0, %v1614
        %v1616 = vpop.f32.mrb[0].mxu0
        %v1617 = vpop.f32.mrb[0].mxu0
        %v1618 = vpop.f32.mrb[0].mxu0
        %1619 = vdwg.mxu0
        %v1622 = vunpack.c.l.b16 %v1569
        %v1623 = vunpack.c.l.b16 %v1570
        %v1624 = vpack.c.b16 %v1623, %v1622
        %v1627 = vsel %vm1342, %v1566, 0
        %1629 = vmatprep.subr.bf16.mxu0 0
        %1630 = vmatpush1.bf16.msra.mxu0 %v1624
        %1631 = vmatprep.subr.bf16.mxu0 0
        %1632 = vmatpush1.bf16.msra.mxu0 0
        %1633 = vmatprep.subr.bf16.mxu0 0
        %1634 = vmatpush1.bf16.msra.mxu0 0
        %1635 = vmatprep.subr.bf16.mxu0 0
        %1636 = vmatpush1.bf16.msra.mxu0 0
        %1637 = vmatprep.subr.bf16.mxu0 0
        %1638 = vmatpush1.bf16.msra.mxu0 0
        %1639 = vmatprep.subr.bf16.mxu0 0
        %1640 = vmatpush1.bf16.msra.mxu0 0
        %1641 = vmatprep.subr.bf16.mxu0 0
        %1642 = vmatpush1.bf16.msra.mxu0 0
        %1643 = vmatprep.subr.bf16.mxu0 0
        %1644 = vmatpush1.bf16.msra.mxu0 0
        %1645 = vmatprep.subr.bf16.mxu0 0
        %1646 = vmatpush1.bf16.msra.mxu0 0
        %1647 = vmatprep.subr.bf16.mxu0 0
        %1648 = vmatpush1.bf16.msra.mxu0 0
        %1649 = vmatprep.subr.bf16.mxu0 0
        %1650 = vmatpush1.bf16.msra.mxu0 0
        %1651 = vmatprep.subr.bf16.mxu0 0
        %1652 = vmatpush1.bf16.msra.mxu0 0
        %1653 = vmatprep.subr.bf16.mxu0 0
        %1654 = vmatpush1.bf16.msra.mxu0 0
        %1655 = vmatprep.subr.bf16.mxu0 0
        %1656 = vmatpush1.bf16.msra.mxu0 0
        %1657 = vmatprep.subr.bf16.mxu0 0
        %1658 = vmatpush1.bf16.msra.mxu0 0
        %1659 = vmatprep.subr.bf16.mxu0 0
        %1660 = vmatpush1.bf16.msra.mxu0 0
        %1661 = vmatprep.mubr.bf16.mxu0 0
        %1662 = vmatmul.mubr.bf16.gmra.mrb[0].mxu0 %v1627
        %v1663 = vpop.f32.mrb[0].mxu0
        %v1664 = vadd.f32 0.0, %v1663
        %v1665 = vpop.f32.mrb[0].mxu0
        %v1666 = vpop.f32.mrb[0].mxu0
        %v1667 = vpop.f32.mrb[0].mxu0
        %1668 = vdwg.mxu0
        %v1669 = vsel %vm990, %v1615, 0.0
        %v1670 = vsel %vm990, %v1664, 0.0
        %v1671 = vadd.f32 %v1669, %v1670
        %v1672 = vld [vmem:[%s916] sm:$0x1]
        %v1674 = vlaneseq
        %v1675 = vshrl.u32 %v1674, 7
        %v1676 = vsub.s32 0, %v1675
        %v1677 = vrot.slane %v1672, %v1676
        %v1679 = vadd.f32 %v1671, %v1677
        %v1680 = vadd.f32 %v953, %v1679
        %v1681 = vld [vmem:[%s919] sm:$0x1]
        %v1682 = vld [vmem:[%s922] sm:$0x1]
        %v1683 = vsel %vm990, %v1680, 0.0
        %1684 = vadd.xlane.f32.xlu0 %v1683
        %v1685 = vpop.xlane.xlu0 %1684
        %v1686 = vrcp.pop 32.0
        %v1687 = vmul.f32 %v1685, %v1686
        %v1688 = vsub.f32 %v1680, %v1687
        %v1689 = vmul.f32 %v1688, %v1688
        %v1690 = vsel %vm990, %v1689, 0.0
        %1691 = vadd.xlane.f32.xlu0 %v1690
        %v1692 = vpop.xlane.xlu0 %1691
        %v1693 = vmul.f32 %v1692, %v1686
        %v1694 = vadd.f32 %v1693, 1e-12
        %v1695 = vrsqrt.pop %v1694
        %v1696 = vmul.f32 %v1688, %v1695
        %v1698 = vlaneseq
        %v1699 = vshrl.u32 %v1698, 7
        %v1700 = vsub.s32 0, %v1699
        %v1701 = vrot.slane %v1681, %v1700
        %v1703 = vmul.f32 %v1696, %v1701
        %v1705 = vlaneseq
        %v1706 = vshrl.u32 %v1705, 7
        %v1707 = vsub.s32 0, %v1706
        %v1708 = vrot.slane %v1682, %v1707
        %v1710 = vadd.f32 %v1703, %v1708
        %v1711 = vpack.c.bf16 %v1710, %v1710
        %v1712 = vld [vmem:[%s927] sm:$0xf]
        %v1713 = vld [vmem:[%s927 + $0x4] sm:$0xf]
        %v1714 = vld [vmem:[%s927 + $0x8] sm:$0xf]
        %v1715 = vld [vmem:[%s927 + $0xc] sm:$0xf]
        %v1716 = vld [vmem:[%s930] sm:$0x1]
        %v1718 = vlaneseq
        %v1719 = vshrl.u32 %v1718, 7
        %v1720 = vsub.s32 0, %v1719
        %v1721 = vrot.slane %v1716, %v1720
        %v1727 = vunpack.c.l.b16 %v1712
        %v1728 = vunpack.c.l.b16 %v1713
        %v1729 = vunpack.c.l.b16 %v1714
        %v1730 = vunpack.c.l.b16 %v1715
        %v1731 = vpack.c.b16 %v1728, %v1727
        %v1732 = vpack.c.b16 %v1730, %v1729
        %v1736 = vsel %vm990, %v1711, 0
        %1738 = vmatprep.subr.bf16.mxu0 0
        %1739 = vmatpush1.bf16.msra.mxu0 %v1731
        %1740 = vmatprep.subr.bf16.mxu0 0
        %1741 = vmatpush1.bf16.msra.mxu0 %v1732
        %1742 = vmatprep.subr.bf16.mxu0 0
        %1743 = vmatpush1.bf16.msra.mxu0 0
        %1744 = vmatprep.subr.bf16.mxu0 0
        %1745 = vmatpush1.bf16.msra.mxu0 0
        %1746 = vmatprep.subr.bf16.mxu0 0
        %1747 = vmatpush1.bf16.msra.mxu0 0
        %1748 = vmatprep.subr.bf16.mxu0 0
        %1749 = vmatpush1.bf16.msra.mxu0 0
        %1750 = vmatprep.subr.bf16.mxu0 0
        %1751 = vmatpush1.bf16.msra.mxu0 0
        %1752 = vmatprep.subr.bf16.mxu0 0
        %1753 = vmatpush1.bf16.msra.mxu0 0
        %1754 = vmatprep.subr.bf16.mxu0 0
        %1755 = vmatpush1.bf16.msra.mxu0 0
        %1756 = vmatprep.subr.bf16.mxu0 0
        %1757 = vmatpush1.bf16.msra.mxu0 0
        %1758 = vmatprep.subr.bf16.mxu0 0
        %1759 = vmatpush1.bf16.msra.mxu0 0
        %1760 = vmatprep.subr.bf16.mxu0 0
        %1761 = vmatpush1.bf16.msra.mxu0 0
        %1762 = vmatprep.subr.bf16.mxu0 0
        %1763 = vmatpush1.bf16.msra.mxu0 0
        %1764 = vmatprep.subr.bf16.mxu0 0
        %1765 = vmatpush1.bf16.msra.mxu0 0
        %1766 = vmatprep.subr.bf16.mxu0 0
        %1767 = vmatpush1.bf16.msra.mxu0 0
        %1768 = vmatprep.subr.bf16.mxu0 0
        %1769 = vmatpush1.bf16.msra.mxu0 0
        %1770 = vmatprep.mubr.bf16.mxu0 0
        %1771 = vmatmul.mubr.bf16.gmra.mrb[0].mxu0 %v1736
        %v1772 = vpop.f32.mrb[0].mxu0
        %v1773 = vadd.f32 %v1721, %v1772
        %v1774 = vpop.f32.mrb[0].mxu0
        %v1775 = vpop.f32.mrb[0].mxu0
        %v1776 = vpop.f32.mrb[0].mxu0
        %1777 = vdwg.mxu0
        %v1778 = vmul.f32 %v1773, %v1773
        %v1779 = vmul.f32 %v1773, %v1778
        %v1780 = vmul.f32 %v1779, 0.044715
        %v1781 = vadd.f32 %v1773, %v1780
        %v1782 = vmul.f32 %v1781, 0.7978846
        %v1783 = vtanh.pop %v1782
        %v1784 = vadd.f32 %v1783, 1.0
        %v1785 = vmul.f32 %v1784, 0.5
        %v1786 = vmul.f32 %v1773, %v1785
        %v1787 = vpack.c.bf16 %v1786, %v1786
        %v1788 = vld [vmem:[%s935] sm:$0xf]
        %v1789 = vld [vmem:[%s935 + $0x4] sm:$0xf]
        %v1790 = vld [vmem:[%s935 + $0x8] sm:$0xf]
        %v1791 = vld [vmem:[%s935 + $0xc] sm:$0xf]
        %v1792 = vld [vmem:[%s935 + $0x10] sm:$0xf]
        %v1793 = vld [vmem:[%s935 + $0x14] sm:$0xf]
        %v1794 = vld [vmem:[%s935 + $0x18] sm:$0xf]
        %v1795 = vld [vmem:[%s935 + $0x1c] sm:$0xf]
        %v1796 = vld [vmem:[%s938] sm:$0x1]
        %v1798 = vlaneseq
        %v1799 = vshrl.u32 %v1798, 7
        %v1800 = vsub.s32 0, %v1799
        %v1801 = vrot.slane %v1796, %v1800
        %v1811 = vunpack.c.l.b16 %v1788
        %v1812 = vunpack.c.l.b16 %v1789
        %v1813 = vunpack.c.l.b16 %v1790
        %v1814 = vunpack.c.l.b16 %v1791
        %v1815 = vunpack.c.l.b16 %v1792
        %v1816 = vunpack.c.l.b16 %v1793
        %v1817 = vunpack.c.l.b16 %v1794
        %v1818 = vunpack.c.l.b16 %v1795
        %v1819 = vpack.c.b16 %v1812, %v1811
        %v1820 = vpack.c.b16 %v1814, %v1813
        %v1821 = vpack.c.b16 %v1816, %v1815
        %v1822 = vpack.c.b16 %v1818, %v1817
        %vm1827 = vcmask 523264
        %v1829 = vsel %vm1827, %v1787, 0
        %1831 = vmatprep.subr.bf16.mxu0 0
        %1832 = vmatpush1.bf16.msra.mxu0 %v1819
        %1833 = vmatprep.subr.bf16.mxu0 0
        %1834 = vmatpush1.bf16.msra.mxu0 %v1820
        %1835 = vmatprep.subr.bf16.mxu0 0
        %1836 = vmatpush1.bf16.msra.mxu0 %v1821
        %1837 = vmatprep.subr.bf16.mxu0 0
        %1838 = vmatpush1.bf16.msra.mxu0 %v1822
        %1839 = vmatprep.subr.bf16.mxu0 0
        %1840 = vmatpush1.bf16.msra.mxu0 0
        %1841 = vmatprep.subr.bf16.mxu0 0
        %1842 = vmatpush1.bf16.msra.mxu0 0
        %1843 = vmatprep.subr.bf16.mxu0 0
        %1844 = vmatpush1.bf16.msra.mxu0 0
        %1845 = vmatprep.subr.bf16.mxu0 0
        %1846 = vmatpush1.bf16.msra.mxu0 0
        %1847 = vmatprep.subr.bf16.mxu0 0
        %1848 = vmatpush1.bf16.msra.mxu0 0
        %1849 = vmatprep.subr.bf16.mxu0 0
        %1850 = vmatpush1.bf16.msra.mxu0 0
        %1851 = vmatprep.subr.bf16.mxu0 0
        %1852 = vmatpush1.bf16.msra.mxu0 0
        %1853 = vmatprep.subr.bf16.mxu0 0
        %1854 = vmatpush1.bf16.msra.mxu0 0
        %1855 = vmatprep.subr.bf16.mxu0 0
        %1856 = vmatpush1.bf16.msra.mxu0 0
        %1857 = vmatprep.subr.bf16.mxu0 0
        %1858 = vmatpush1.bf16.msra.mxu0 0
        %1859 = vmatprep.subr.bf16.mxu0 0
        %1860 = vmatpush1.bf16.msra.mxu0 0
        %1861 = vmatprep.subr.bf16.mxu0 0
        %1862 = vmatpush1.bf16.msra.mxu0 0
        %1863 = vmatprep.mubr.bf16.mxu0 0
        %1864 = vmatmul.mubr.bf16.gmra.mrb[0].mxu0 %v1829
        %v1865 = vpop.f32.mrb[0].mxu0
        %v1866 = vadd.f32 %v1801, %v1865
        %v1867 = vpop.f32.mrb[0].mxu0
        %v1868 = vpop.f32.mrb[0].mxu0
        %v1869 = vpop.f32.mrb[0].mxu0
        %1870 = vdwg.mxu0
        %v1871 = vadd.f32 %v1710, %v1866
        %v1872 = vld [vmem:[%s941] sm:$0x1]
        %v1873 = vld [vmem:[%s944] sm:$0x1]
        %v1874 = vsel %vm990, %v1871, 0.0
        %1875 = vadd.xlane.f32.xlu0 %v1874
        %v1876 = vpop.xlane.xlu0 %1875
        %v1877 = vmul.f32 %v1876, %v1686
        %v1878 = vsub.f32 %v1871, %v1877
        %v1879 = vmul.f32 %v1878, %v1878
        %v1880 = vsel %vm990, %v1879, 0.0
        %1881 = vadd.xlane.f32.xlu0 %v1880
        %v1882 = vpop.xlane.xlu0 %1881
        %v1883 = vmul.f32 %v1882, %v1686
        %v1884 = vadd.f32 %v1883, 1e-12
        %v1885 = vrsqrt.pop %v1884
        %v1886 = vmul.f32 %v1878, %v1885
        %v1888 = vlaneseq
        %v1889 = vshrl.u32 %v1888, 7
        %v1890 = vsub.s32 0, %v1889
        %v1891 = vrot.slane %v1872, %v1890
        %v1893 = vmul.f32 %v1886, %v1891
        %v1895 = vlaneseq
        %v1896 = vshrl.u32 %v1895, 7
        %v1897 = vsub.s32 0, %v1896
        %v1898 = vrot.slane %v1873, %v1897
        %v1900 = vadd.f32 %v1893, %v1898
        %1901 = vst.msk [vmem:[#allocation2] sm:$0xff] %vm990, %v1900
        %p1902 = scmp.eq.s32.totalorder %s43, 1
        // Predicated region
        $region101: #{tpu_custom_call.1} parent=95 // pred_check
          %p1903 = pneg %p1902
        $region102: #{tpu_custom_call.1} parent=95 // pred_check_branch
          %1905 = sbr.rel (%p1903) target = $region104
        $region103: #{tpu_custom_call.1} parent=95 // pred_region
          %v1906 = vsel %vm990, %v1900, 0.0
          %1907 = vst [vmem:[%s864] sm:$0xff] %v1906
          %v1908 = vld [vmem:[%s881] sm:$0x1]
          %v1909 = vlaneseq
          %v1910 = vshrl.u32 %v1909, 7
          %v1911 = vlaneseq
          %v1912 = vshrl.u32 %v1911, 7
          %v1913 = vsub.s32 0, %v1912
          %v1914 = vrot.slane %v1908, %v1913
          %vm1915 = vcmp.eq.s32.totalorder %v1910, %v1914
          %v1916 = vsel %vm1915, 1, 0
          %v1917 = vcvt.s32.f32 %v1916
          %v1918 = vpack.c.bf16 %v1917, %v1917
          %v1919 = vpack.c.bf16 %v1900, %v1900
          %v1921 = vsel %vm1445, %v1918, 0
          %v1924 = vsel %vm1475, %v1919, 0
          %1926 = vmatprep.subr.bf16.mxu0 0
          %1927 = vmatpush1.bf16.msra.mxu0 %v1924
          %1928 = vmatprep.subr.bf16.mxu0 0
          %1929 = vmatpush1.bf16.msra.mxu0 0
          %1930 = vmatprep.subr.bf16.mxu0 0
          %1931 = vmatpush1.bf16.msra.mxu0 0
          %1932 = vmatprep.subr.bf16.mxu0 0
          %1933 = vmatpush1.bf16.msra.mxu0 0
          %1934 = vmatprep.subr.bf16.mxu0 0
          %1935 = vmatpush1.bf16.msra.mxu0 0
          %1936 = vmatprep.subr.bf16.mxu0 0
          %1937 = vmatpush1.bf16.msra.mxu0 0
          %1938 = vmatprep.subr.bf16.mxu0 0
          %1939 = vmatpush1.bf16.msra.mxu0 0
          %1940 = vmatprep.subr.bf16.mxu0 0
          %1941 = vmatpush1.bf16.msra.mxu0 0
          %1942 = vmatprep.subr.bf16.mxu0 0
          %1943 = vmatpush1.bf16.msra.mxu0 0
          %1944 = vmatprep.subr.bf16.mxu0 0
          %1945 = vmatpush1.bf16.msra.mxu0 0
          %1946 = vmatprep.subr.bf16.mxu0 0
          %1947 = vmatpush1.bf16.msra.mxu0 0
          %1948 = vmatprep.subr.bf16.mxu0 0
          %1949 = vmatpush1.bf16.msra.mxu0 0
          %1950 = vmatprep.subr.bf16.mxu0 0
          %1951 = vmatpush1.bf16.msra.mxu0 0
          %1952 = vmatprep.subr.bf16.mxu0 0
          %1953 = vmatpush1.bf16.msra.mxu0 0
          %1954 = vmatprep.subr.bf16.mxu0 0
          %1955 = vmatpush1.bf16.msra.mxu0 0
          %1956 = vmatprep.subr.bf16.mxu0 0
          %1957 = vmatpush1.bf16.msra.mxu0 0
          %1958 = vmatprep.mubr.bf16.mxu0 0
          %1959 = vmatmul.mubr.bf16.gmra.mrb[0].mxu0 %v1921
          %v1960 = vpop.f32.mrb[0].mxu0
          %v1961 = vadd.f32 0.0, %v1960
          %v1962 = vpop.f32.mrb[0].mxu0
          %v1963 = vpop.f32.mrb[0].mxu0
          %v1964 = vpop.f32.mrb[0].mxu0
          %1965 = vdwg.mxu0
          %v1966 = vsel %vm1445, %v1917, 0.0
          %1967 = vadd.xlane.f32.xlu0 %v1966
          %v1968 = vpop.xlane.xlu0 %1967
          %v1969 = vmax.f32 %v1968, 1.0
          %v1970 = vrcp.pop %v1969
          %v1971 = vmul.f32 %v1961, %v1970
          %v1972 = vsel %vm990, %v1971, 0.0
          %1973 = vst [vmem:[%s871] sm:$0xff] %v1972
        $region104: #{tpu_custom_call.1} parent=95 // pred_fallthru
          _
        %s1974 = sand.u32 %s552, 1
        %s1975 = scalar_lea.sflag [#allocation4], %s1974
        %s1976 = sand.u32 %s552, 1
        %s1977 = smul.addr %s1976, 8
        %s1978 = scalar_lea.vmem [#allocation3], %s1977
        %s1979 = sand.u32 %s578, 1
        %s1980 = scalar_lea.sflag [#allocation6], %s1979
        %s1981 = sand.u32 %s578, 1
        %s1982 = smul.addr %s1981, 8
        %s1983 = scalar_lea.vmem [#allocation5], %s1982
        // Predicated region
        $region105: #{tpu_custom_call.1} parent=95 // pred_check
          %p1984 = pneg %p562
        $region106: #{tpu_custom_call.1} parent=95 // pred_check_branch
          %1986 = sbr.rel (%p1984) target = $region108
        $region107: #{tpu_custom_call.1} parent=95 // pred_region
          %s1988 = ssub.s32 128, 128
          %1989 = vsyncadd %s1975, %s1988
          %s1990 = smul.addr %s42, 128
          %s1991 = scalar_lea.hbm %s19, %s1990
          %s1993 = sshll.u32 %s1978, 4
          %s1994 = int_to_ptr.vmem [resolvable:$true] %s1993
          %1996 = dma.vmem_to_hbm [thread:$0]  %s1994, 128, %s1991, %s1975
        $region108: #{tpu_custom_call.1} parent=95 // pred_fallthru
          _
        // Predicated region
        $region109: #{tpu_custom_call.1} parent=95 // pred_check
          %p1997 = pneg %p588
        $region110: #{tpu_custom_call.1} parent=95 // pred_check_branch
          %1999 = sbr.rel (%p1997) target = $region112
        $region111: #{tpu_custom_call.1} parent=95 // pred_region
          %s2001 = ssub.s32 128, 128
          %2002 = vsyncadd %s1980, %s2001
          %s2003 = smul.addr %s42, 128
          %s2004 = scalar_lea.hbm %s20, %s2003
          %s2006 = sshll.u32 %s1983, 4
          %s2007 = int_to_ptr.vmem [resolvable:$true] %s2006
          %2009 = dma.vmem_to_hbm [thread:$0]  %s2007, 128, %s2004, %s1980
        $region112: #{tpu_custom_call.1} parent=95 // pred_fallthru
          _
      $region96: #{tpu_custom_call.1} parent=5 // pred_fallthru
        _
      %p2010 = scmp.le.s32.totalorder 2, %s33
      // Predicated region
      $region113: #{tpu_custom_call.1} parent=5 // pred_check
        %p2011 = pneg %p2010
      $region114: #{tpu_custom_call.1} parent=5 // pred_check_branch
        %2013 = sbr.rel (%p2011) target = $region116
      $region115: #{tpu_custom_call.1} parent=5 // pred_region
        %s2014 = ssub.s32 %s33, 2
        // Predicated region
        $region117: #{tpu_custom_call.1} parent=115 // pred_check
          %p2015 = pneg %p568
        $region118: #{tpu_custom_call.1} parent=115 // pred_check_branch
          %2017 = sbr.rel (%p2015) target = $region120
        $region119: #{tpu_custom_call.1} parent=115 // pred_region
          %s2018 = sand.u32 %s553, 1
          %s2019 = scalar_lea.sflag [#allocation4], %s2018
          %s2020 = sand.u32 %s553, 1
          %s2021 = smul.addr %s2020, 8
          %s2022 = scalar_lea.vmem [#allocation3], %s2021
          %2023 = dma.done %s2019, 128
        $region120: #{tpu_custom_call.1} parent=115 // pred_fallthru
          _
        // Predicated region
        $region121: #{tpu_custom_call.1} parent=115 // pred_check
          %p2024 = pneg %p594
        $region122: #{tpu_custom_call.1} parent=115 // pred_check_branch
          %2026 = sbr.rel (%p2024) target = $region124
        $region123: #{tpu_custom_call.1} parent=115 // pred_region
          %s2027 = sand.u32 %s579, 1
          %s2028 = scalar_lea.sflag [#allocation6], %s2027
          %s2029 = sand.u32 %s579, 1
          %s2030 = smul.addr %s2029, 8
          %s2031 = scalar_lea.vmem [#allocation5], %s2030
          %2032 = dma.done %s2028, 128
        $region124: #{tpu_custom_call.1} parent=115 // pred_fallthru
          _
      $region116: #{tpu_custom_call.1} parent=5 // pred_fallthru
        _
    $region6: #{tpu_custom_call.1} parent=1 // loop_footer
      %s37 = sadd.s32 1, %s33
    $region7: #{tpu_custom_call.1} parent=1 // loop_footer_branch
      %32 = sbr.rel target = $region3
    $region8: #{tpu_custom_call.1} parent=1 // loop_exit
      _
    %2033 = vsyncpa [#allocation4], 1
    %s2034 = scalar_lea.sflag [#allocation4], 1
    %2035 = vsyncpa %s2034, 1
    %2036 = vsyncpa [#allocation6], 1
    %s2037 = scalar_lea.sflag [#allocation6], 1
    %2038 = vsyncpa %s2037, 1

</llo_original>
